<compile_context>
chip_gen: v7x
topology: tpu7x:2x2x1
jax: 0.10.0
libtpu: 0.0.40
codegen_flags: <defaults>
</compile_context>

<pallas_src>
import jax
import jax.numpy as jnp
from jax.experimental import pallas as pl
from jax.experimental.pallas import tpu as pltpu

# ---- sizes (small but consistent with the module) -------------------------
B = 2                  # batch
C_IN = 3               # RGB input, as torchvision backbones expect
H = W = 16             # spatial
NUM_FTRS = 512         # ResNet18 feature width (model.fc.in_features)
FEATURE_DIM = 128      # default feature_dim
HIDDEN = 4 * FEATURE_DIM
K_RAW = C_IN * 9       # im2col K for a 3x3 conv (27)
K_PAD = 32             # K padded to a sublane-friendly size
BN_EPS = 1e-5
NORM_EPS = 1e-12


def ipirm_kernel(patches_ref, wconv_ref, pool_ref, w1_ref, gamma_ref, beta_ref,
                 w2_ref, b2_ref, feat_norm_ref, out_norm_ref):
    # ----- backbone stand-in f(x): 3x3 conv as ONE (B*H*W, K_PAD)x(K_PAD, C_out)
    # bf16 MXU matmul with f32 accumulation, then ReLU (f32).
    conv = jnp.dot(patches_ref[...], wconv_ref[...],
                   preferred_element_type=jnp.float32)           # (B*H*W, NUM_FTRS)
    conv = jnp.maximum(conv, 0.0)

    # ----- global average pool as a tiny f32 matmul with the constant
    # block-diagonal (B, B*H*W) matrix of 1/(H*W)  == flatten(avgpool(f(x)), 1)
    feature = jnp.dot(pool_ref[...], conv,
                      preferred_element_type=jnp.float32)        # (B, NUM_FTRS)

    # ----- g: Linear(num_ftrs->4fd, no bias) -> BatchNorm1d -> ReLU -> Linear(+bias)
    h = jnp.dot(feature.astype(jnp.bfloat16), w1_ref[...],
                preferred_element_type=jnp.float32)              # (B, HIDDEN)
    mu = jnp.mean(h, axis=0, keepdims=True)
    var = jnp.mean((h - mu) * (h - mu), axis=0, keepdims=True)   # biased var (PyTorch BN)
    h_bn = (h - mu) * jax.lax.rsqrt(var + BN_EPS) * gamma_ref[...] + beta_ref[...]
    h_relu = jnp.maximum(h_bn, 0.0)
    out = jnp.dot(h_relu.astype(jnp.bfloat16), w2_ref[...],
                  preferred_element_type=jnp.float32) + b2_ref[...]  # (B, FEATURE_DIM)

    # ----- F.normalize(dim=-1), eps=1e-12, via one EUP rsqrt (no vector divide)
    f_sq = jnp.sum(feature * feature, axis=-1, keepdims=True)
    feat_norm_ref[...] = feature * jax.lax.rsqrt(
        jnp.maximum(f_sq, NORM_EPS * NORM_EPS))
    o_sq = jnp.sum(out * out, axis=-1, keepdims=True)
    out_norm_ref[...] = out * jax.lax.rsqrt(
        jnp.maximum(o_sq, NORM_EPS * NORM_EPS))


def _full_spec(shape):
    nd = len(shape)
    return pl.BlockSpec(shape, lambda i, nd=nd: (0,) * nd)


def ipirm_forward(patches, wconv_mat, pool_mat, w1_mat, gamma, beta, w2_mat, b2):
    out_shapes = (
        jax.ShapeDtypeStruct((B, NUM_FTRS), jnp.float32),     # normalized feature
        jax.ShapeDtypeStruct((B, FEATURE_DIM), jnp.float32),  # normalized out
    )
    return pl.pallas_call(
        ipirm_kernel,
        out_shape=out_shapes,
        grid=(1,),
        in_specs=[
            _full_spec((B * H * W, K_PAD)),    # patches, bf16, batch merged into M
            _full_spec((K_PAD, NUM_FTRS)),     # conv weight (im2col layout), bf16
            _full_spec((B, B * H * W)),        # constant avg-pool matrix, f32
            _full_spec((NUM_FTRS, HIDDEN)),    # g[0] Linear weight (transposed), bf16
            _full_spec((1, HIDDEN)),           # BN gamma
            _full_spec((1, HIDDEN)),           # BN beta
            _full_spec((HIDDEN, FEATURE_DIM)), # g[3] Linear weight (transposed), bf16
            _full_spec((1, FEATURE_DIM)),      # g[3] Linear bias
        ],
        out_specs=[
            _full_spec((B, NUM_FTRS)),
            _full_spec((B, FEATURE_DIM)),
        ],
        # TODO(synk): grid=(1,) uses a single TensorCore; at these tiny sizes
        # (~0.7 MB working set, latency-bound) sharding over v7x's second TC
        # would only add overhead. Tile over H*W / batch with a "parallel"
        # leading axis if this ever scales to real ResNet feature maps.
        compiler_params=pltpu.CompilerParams(
            dimension_semantics=("arbitrary",)),
    )(patches, wconv_mat, pool_mat, w1_mat, gamma, beta, w2_mat, b2)


def im2col_merged(x):
    """x: (B, C, H, W) NCHW -> (B*H*W, K_PAD) bf16 patches, 3x3 / stride 1 / pad 1.

    K ordering is (kh, kw, c_in); no 9x-expanded-array transpose: one tiny NHWC
    transpose of the 8 KB padded input, 9 static slices, a lane concat and a
    contiguous reshape. All of this fuses under jax.jit into one producer op.
    """
    xp = jnp.pad(x, ((0, 0), (0, 0), (1, 1), (1, 1)))        # (B, C, H+2, W+2)
    xhwc = jnp.transpose(xp, (0, 2, 3, 1))                    # (B, H+2, W+2, C)
    cols = [xhwc[:, kh:kh + H, kw:kw + W, :]
            for kh in range(3) for kw in range(3)]            # each (B, H, W, C)
    p = jnp.concatenate(cols, axis=-1).reshape(B * H * W, K_RAW)
    p = jnp.pad(p, ((0, 0), (0, K_PAD - K_RAW)))              # zero-pad K 27 -> 32
    return p.astype(jnp.bfloat16)


@jax.jit
def ipirm_from_image(x, wconv_mat, pool_mat, w1_mat, gamma, beta, w2_mat, b2):
    patches = im2col_merged(x)
    return ipirm_forward(patches, wconv_mat, pool_mat, w1_mat, gamma, beta,
                         w2_mat, b2)


if __name__ == "__main__":
    key = jax.random.PRNGKey(0)
    k0, k1, k2, k3, k4 = jax.random.split(key, 5)

    # deterministic synthetic parameters (shapes match the module's __init__)
    # conv weight in torch layout (C_out, C_in, 3, 3) -> (K_PAD, C_out),
    # K ordering (kh, kw, c_in) to match im2col_merged, zero-padded 27 -> 32.
    wconv = jax.random.normal(k0, (NUM_FTRS, C_IN, 3, 3), jnp.float32) * 0.1
    wconv_mat = jnp.transpose(wconv, (2, 3, 1, 0)).reshape(K_RAW, NUM_FTRS)
    wconv_mat = jnp.pad(wconv_mat, ((0, K_PAD - K_RAW), (0, 0))).astype(jnp.bfloat16)

    w1 = jax.random.normal(k1, (HIDDEN, NUM_FTRS), jnp.float32) * 0.02  # torch (out,in)
    w1_mat = w1.T.astype(jnp.bfloat16)                        # (512, 512)
    gamma = jnp.ones((1, HIDDEN), jnp.float32)                # BatchNorm1d default init
    beta = jnp.zeros((1, HIDDEN), jnp.float32)

    w2 = jax.random.normal(k2, (FEATURE_DIM, HIDDEN), jnp.float32) * 0.02
    w2_mat = w2.T.astype(jnp.bfloat16)                        # (512, 128)
    b2 = jax.random.normal(k3, (1, FEATURE_DIM), jnp.float32) * 0.02

    # constant global-average-pool matrix: block-diagonal 1/(H*W), shape (B, B*H*W)
    pool_mat = (jnp.kron(jnp.eye(B, dtype=jnp.float32),
                         jnp.ones((1, H * W), jnp.float32)) / float(H * W))

    # input image batch, NCHW like PyTorch
    x = jax.random.normal(k4, (B, C_IN, H, W), jnp.float32)

    feat_n, out_n = ipirm_from_image(x, wconv_mat, pool_mat, w1_mat, gamma,
                                     beta, w2_mat, b2)
    jax.block_until_ready((feat_n, out_n))

    assert feat_n.shape == (B, NUM_FTRS) and out_n.shape == (B, FEATURE_DIM)
    print("KERNEL_OK")
</pallas_src>

<mosaic_0001>
module attributes {stable_mosaic.version = 11 : i64} {
  func.func @ipirm_kernel(%arg0: i32, %arg1: memref<512x32xbf16, #tpu.memory_space<vmem>>, %arg2: memref<32x512xbf16, #tpu.memory_space<vmem>>, %arg3: memref<2x512xf32, #tpu.memory_space<vmem>>, %arg4: memref<512x512xbf16, #tpu.memory_space<vmem>>, %arg5: memref<1x512xf32, #tpu.memory_space<vmem>>, %arg6: memref<1x512xf32, #tpu.memory_space<vmem>>, %arg7: memref<512x128xbf16, #tpu.memory_space<vmem>>, %arg8: memref<1x128xf32, #tpu.memory_space<vmem>>, %arg9: memref<2x512xf32, #tpu.memory_space<vmem>>, %arg10: memref<2x128xf32, #tpu.memory_space<vmem>>) attributes {dimension_semantics = [#tpu.dimension_semantics<arbitrary>], iteration_bounds = array<i64: 1>, scalar_prefetch = 0 : i64, scratch_operands = 0 : i64, tpu.core_type = #tpu.core_type<tc>, window_params = [{pipeline_mode = #tpu.pipeline_mode<synchronous>, transform_indices = @transform_0, window_bounds = array<i64: 512, 32>}, {pipeline_mode = #tpu.pipeline_mode<synchronous>, transform_indices = @transform_1, window_bounds = array<i64: 32, 512>}, {pipeline_mode = #tpu.pipeline_mode<synchronous>, transform_indices = @transform_2, window_bounds = array<i64: 2, 512>}, {pipeline_mode = #tpu.pipeline_mode<synchronous>, transform_indices = @transform_3, window_bounds = array<i64: 512, 512>}, {pipeline_mode = #tpu.pipeline_mode<synchronous>, transform_indices = @transform_4, window_bounds = array<i64: 1, 512>}, {pipeline_mode = #tpu.pipeline_mode<synchronous>, transform_indices = @transform_5, window_bounds = array<i64: 1, 512>}, {pipeline_mode = #tpu.pipeline_mode<synchronous>, transform_indices = @transform_6, window_bounds = array<i64: 512, 128>}, {pipeline_mode = #tpu.pipeline_mode<synchronous>, transform_indices = @transform_7, window_bounds = array<i64: 1, 128>}, {pipeline_mode = #tpu.pipeline_mode<synchronous>, transform_indices = @transform_8, window_bounds = array<i64: 2, 512>}, {pipeline_mode = #tpu.pipeline_mode<synchronous>, transform_indices = @transform_9, window_bounds = array<i64: 2, 128>}]} {
    %c0 = arith.constant 0 : index
    %c0_0 = arith.constant 0 : index
    %0 = vector.load %arg1[%c0, %c0_0] : memref<512x32xbf16, #tpu.memory_space<vmem>>, vector<512x32xbf16>
    %c0_1 = arith.constant 0 : index
    %c0_2 = arith.constant 0 : index
    %1 = vector.load %arg2[%c0_1, %c0_2] : memref<32x512xbf16, #tpu.memory_space<vmem>>, vector<32x512xbf16>
    %cst = arith.constant dense<0.000000e+00> : vector<512x512xf32>
    %2 = tpu.matmul %0, %1, %cst {dimension_numbers = #tpu.dot_dimension_numbers<[1], [0], [0], [1], [0, 0, 1, 1], [], []>} : vector<512x32xbf16>, vector<32x512xbf16>, vector<512x512xf32> -> vector<512x512xf32>
    %cst_3 = arith.constant 0.000000e+00 : f32
    %3 = vector.broadcast %cst_3 : f32 to vector<512x512xf32>
    %4 = arith.maximumf %2, %3 : vector<512x512xf32>
    %c0_4 = arith.constant 0 : index
    %c0_5 = arith.constant 0 : index
    %5 = vector.load %arg3[%c0_4, %c0_5] : memref<2x512xf32, #tpu.memory_space<vmem>>, vector<2x512xf32>
    %cst_6 = arith.constant dense<0.000000e+00> : vector<2x512xf32>
    %6 = tpu.matmul %5, %4, %cst_6 {dimension_numbers = #tpu.dot_dimension_numbers<[1], [0], [0], [1], [0, 0, 1, 1], [], []>} : vector<2x512xf32>, vector<512x512xf32>, vector<2x512xf32> -> vector<2x512xf32>
    %7 = arith.truncf %6 : vector<2x512xf32> to vector<2x512xbf16>
    %c0_7 = arith.constant 0 : index
    %c0_8 = arith.constant 0 : index
    %8 = vector.load %arg4[%c0_7, %c0_8] : memref<512x512xbf16, #tpu.memory_space<vmem>>, vector<512x512xbf16>
    %cst_9 = arith.constant dense<0.000000e+00> : vector<2x512xf32>
    %9 = tpu.matmul %7, %8, %cst_9 {dimension_numbers = #tpu.dot_dimension_numbers<[1], [0], [0], [1], [0, 0, 1, 1], [], []>} : vector<2x512xbf16>, vector<512x512xbf16>, vector<2x512xf32> -> vector<2x512xf32>
    %cst_10 = arith.constant dense<0.000000e+00> : vector<512xf32>
    %10 = vector.multi_reduction <add>, %9, %cst_10 [0] : vector<2x512xf32> to vector<512xf32>
    %11 = vector.shape_cast %10 : vector<512xf32> to vector<1x512xf32>
    %cst_11 = arith.constant 2.000000e+00 : f32
    %12 = vector.broadcast %cst_11 : f32 to vector<1x512xf32>
    %13 = arith.divf %11, %12 : vector<1x512xf32>
    %14 = vector.broadcast %13 : vector<1x512xf32> to vector<2x512xf32>
    %15 = arith.subf %9, %14 : vector<2x512xf32>
    %16 = vector.broadcast %13 : vector<1x512xf32> to vector<2x512xf32>
    %17 = arith.subf %9, %16 : vector<2x512xf32>
    %18 = arith.mulf %15, %17 : vector<2x512xf32>
    %cst_12 = arith.constant dense<0.000000e+00> : vector<512xf32>
    %19 = vector.multi_reduction <add>, %18, %cst_12 [0] : vector<2x512xf32> to vector<512xf32>
    %20 = vector.shape_cast %19 : vector<512xf32> to vector<1x512xf32>
    %cst_13 = arith.constant 2.000000e+00 : f32
    %21 = vector.broadcast %cst_13 : f32 to vector<1x512xf32>
    %22 = arith.divf %20, %21 : vector<1x512xf32>
    %23 = vector.broadcast %13 : vector<1x512xf32> to vector<2x512xf32>
    %24 = arith.subf %9, %23 : vector<2x512xf32>
    %cst_14 = arith.constant 9.99999974E-6 : f32
    %25 = vector.broadcast %cst_14 : f32 to vector<1x512xf32>
    %26 = arith.addf %22, %25 : vector<1x512xf32>
    %27 = math.rsqrt %26 : vector<1x512xf32>
    %28 = vector.broadcast %27 : vector<1x512xf32> to vector<2x512xf32>
    %29 = arith.mulf %24, %28 : vector<2x512xf32>
    %c0_15 = arith.constant 0 : index
    %c0_16 = arith.constant 0 : index
    %30 = vector.load %arg5[%c0_15, %c0_16] : memref<1x512xf32, #tpu.memory_space<vmem>>, vector<1x512xf32>
    %31 = vector.broadcast %30 : vector<1x512xf32> to vector<2x512xf32>
    %32 = arith.mulf %29, %31 : vector<2x512xf32>
    %c0_17 = arith.constant 0 : index
    %c0_18 = arith.constant 0 : index
    %33 = vector.load %arg6[%c0_17, %c0_18] : memref<1x512xf32, #tpu.memory_space<vmem>>, vector<1x512xf32>
    %34 = vector.broadcast %33 : vector<1x512xf32> to vector<2x512xf32>
    %35 = arith.addf %32, %34 : vector<2x512xf32>
    %cst_19 = arith.constant 0.000000e+00 : f32
    %36 = vector.broadcast %cst_19 : f32 to vector<2x512xf32>
    %37 = arith.maximumf %35, %36 : vector<2x512xf32>
    %38 = arith.truncf %37 : vector<2x512xf32> to vector<2x512xbf16>
    %c0_20 = arith.constant 0 : index
    %c0_21 = arith.constant 0 : index
    %39 = vector.load %arg7[%c0_20, %c0_21] : memref<512x128xbf16, #tpu.memory_space<vmem>>, vector<512x128xbf16>
    %cst_22 = arith.constant dense<0.000000e+00> : vector<2x128xf32>
    %40 = tpu.matmul %38, %39, %cst_22 {dimension_numbers = #tpu.dot_dimension_numbers<[1], [0], [0], [1], [0, 0, 1, 1], [], []>} : vector<2x512xbf16>, vector<512x128xbf16>, vector<2x128xf32> -> vector<2x128xf32>
    %c0_23 = arith.constant 0 : index
    %c0_24 = arith.constant 0 : index
    %41 = vector.load %arg8[%c0_23, %c0_24] : memref<1x128xf32, #tpu.memory_space<vmem>>, vector<1x128xf32>
    %42 = vector.broadcast %41 : vector<1x128xf32> to vector<2x128xf32>
    %43 = arith.addf %40, %42 : vector<2x128xf32>
    %44 = arith.mulf %6, %6 : vector<2x512xf32>
    %cst_25 = arith.constant dense<0.000000e+00> : vector<2xf32>
    %45 = vector.multi_reduction <add>, %44, %cst_25 [1] : vector<2x512xf32> to vector<2xf32>
    %46 = vector.shape_cast %45 : vector<2xf32> to vector<2x1xf32>
    %cst_26 = arith.constant 1.000000e-24 : f32
    %47 = vector.broadcast %cst_26 : f32 to vector<2x1xf32>
    %48 = arith.maximumf %46, %47 : vector<2x1xf32>
    %49 = math.rsqrt %48 : vector<2x1xf32>
    %50 = vector.broadcast %49 : vector<2x1xf32> to vector<2x512xf32>
    %51 = arith.mulf %6, %50 : vector<2x512xf32>
    %c0_27 = arith.constant 0 : index
    %c0_28 = arith.constant 0 : index
    %52 = vector.load %arg9[%c0_27, %c0_28] : memref<2x512xf32, #tpu.memory_space<vmem>>, vector<2x512xf32>
    tpu.vector_store %arg9[%c0_27, %c0_28], %51 {strides = array<i32>} : memref<2x512xf32, #tpu.memory_space<vmem>>, vector<2x512xf32>,
    %53 = arith.mulf %43, %43 : vector<2x128xf32>
    %cst_29 = arith.constant dense<0.000000e+00> : vector<2xf32>
    %54 = vector.multi_reduction <add>, %53, %cst_29 [1] : vector<2x128xf32> to vector<2xf32>
    %55 = vector.shape_cast %54 : vector<2xf32> to vector<2x1xf32>
    %cst_30 = arith.constant 1.000000e-24 : f32
    %56 = vector.broadcast %cst_30 : f32 to vector<2x1xf32>
    %57 = arith.maximumf %55, %56 : vector<2x1xf32>
    %58 = math.rsqrt %57 : vector<2x1xf32>
    %59 = vector.broadcast %58 : vector<2x1xf32> to vector<2x128xf32>
    %60 = arith.mulf %43, %59 : vector<2x128xf32>
    %c0_31 = arith.constant 0 : index
    %c0_32 = arith.constant 0 : index
    %61 = vector.load %arg10[%c0_31, %c0_32] : memref<2x128xf32, #tpu.memory_space<vmem>>, vector<2x128xf32>
    tpu.vector_store %arg10[%c0_31, %c0_32], %60 {strides = array<i32>} : memref<2x128xf32, #tpu.memory_space<vmem>>, vector<2x128xf32>,
    return
  }
  func.func @transform_0(%arg0: i32) -> (i32, i32) {
    %c0_i32 = arith.constant 0 : i32
    %c0_i32_0 = arith.constant 0 : i32
    %c0_i32_1 = arith.constant 0 : i32
    return %c0_i32, %c0_i32_0 : i32, i32
  }
  func.func @transform_1(%arg0: i32) -> (i32, i32) {
    %c0_i32 = arith.constant 0 : i32
    %c0_i32_0 = arith.constant 0 : i32
    %c0_i32_1 = arith.constant 0 : i32
    return %c0_i32, %c0_i32_0 : i32, i32
  }
  func.func @transform_2(%arg0: i32) -> (i32, i32) {
    %c0_i32 = arith.constant 0 : i32
    %c0_i32_0 = arith.constant 0 : i32
    %c0_i32_1 = arith.constant 0 : i32
    return %c0_i32, %c0_i32_0 : i32, i32
  }
  func.func @transform_3(%arg0: i32) -> (i32, i32) {
    %c0_i32 = arith.constant 0 : i32
    %c0_i32_0 = arith.constant 0 : i32
    %c0_i32_1 = arith.constant 0 : i32
    return %c0_i32, %c0_i32_0 : i32, i32
  }
  func.func @transform_4(%arg0: i32) -> (i32, i32) {
    %c0_i32 = arith.constant 0 : i32
    %c0_i32_0 = arith.constant 0 : i32
    %c0_i32_1 = arith.constant 0 : i32
    return %c0_i32, %c0_i32_0 : i32, i32
  }
  func.func @transform_5(%arg0: i32) -> (i32, i32) {
    %c0_i32 = arith.constant 0 : i32
    %c0_i32_0 = arith.constant 0 : i32
    %c0_i32_1 = arith.constant 0 : i32
    return %c0_i32, %c0_i32_0 : i32, i32
  }
  func.func @transform_6(%arg0: i32) -> (i32, i32) {
    %c0_i32 = arith.constant 0 : i32
    %c0_i32_0 = arith.constant 0 : i32
    %c0_i32_1 = arith.constant 0 : i32
    return %c0_i32, %c0_i32_0 : i32, i32
  }
  func.func @transform_7(%arg0: i32) -> (i32, i32) {
    %c0_i32 = arith.constant 0 : i32
    %c0_i32_0 = arith.constant 0 : i32
    %c0_i32_1 = arith.constant 0 : i32
    return %c0_i32, %c0_i32_0 : i32, i32
  }
  func.func @transform_8(%arg0: i32) -> (i32, i32) {
    %c0_i32 = arith.constant 0 : i32
    %c0_i32_0 = arith.constant 0 : i32
    %c0_i32_1 = arith.constant 0 : i32
    return %c0_i32, %c0_i32_0 : i32, i32
  }
  func.func @transform_9(%arg0: i32) -> (i32, i32) {
    %c0_i32 = arith.constant 0 : i32
    %c0_i32_0 = arith.constant 0 : i32
    %c0_i32_1 = arith.constant 0 : i32
    return %c0_i32, %c0_i32_0 : i32, i32
  }
}

</mosaic_0001>

<llo_original>
// kernel: ipirm_from_image.1
$region0: #{ipirm_from_image.1}
  #allocation0 [shape = 'u32[]', space=smem, size = 0x4, offset = 0x4, fixed_abs, tag = 'smem constant byte address 0x4 - core index']
  #allocation1 [shape = 'u32[144,128]{1,0:T(1,128)}', space=vmem, size = 0x12000, scoped, tag = 'internal scratch']
  %s0 = inlined_call_operand.vmem [shape: bf16[512,32], index: 0, kind: input, shape index: {}]
  %s1 = inlined_call_operand.vmem [shape: bf16[32,512], index: 1, kind: input, shape index: {}]
  %s2 = inlined_call_operand.vmem [shape: f32[2,512], index: 2, kind: input, shape index: {}]
  %s3 = inlined_call_operand.vmem [shape: bf16[512,512], index: 3, kind: input, shape index: {}]
  %s4 = inlined_call_operand.vmem [shape: f32[1,512], index: 4, kind: input, shape index: {}]
  %s5 = inlined_call_operand.vmem [shape: f32[1,512], index: 5, kind: input, shape index: {}]
  %s6 = inlined_call_operand.vmem [shape: bf16[512,128], index: 6, kind: input, shape index: {}]
  %s7 = inlined_call_operand.vmem [shape: f32[1,128], index: 7, kind: input, shape index: {}]
  %s8 = inlined_call_operand.hbm [shape: f32[2,512], index: 8, kind: output, shape index: {0}]
  %s9 = inlined_call_operand.hbm [shape: f32[2,128], index: 9, kind: output, shape index: {1}]
  %10 = xla_tuple %s8, %s9
  %s11 = sld [smem:[#allocation0]]
  $region50: #{ipirm_from_image.1} parent=0
    _
  %s13 = ssub.s32 1, %s11
  %s14 = scalar_select 0, %s13, %s11
  $region1: #{ipirm_from_image.1} parent=0
    #allocation2 [shape = 'u8[4096]{0}', space=vmem, size = 0x1000, scoped, tag = 'output window, operand 0, single buffered']
    #allocation3 [shape = 's32[1]{0}', space=sflag, size = 0x4, scoped, tag = 'scoped memory for ipirm_from_image.1']
    #allocation4 [shape = 'u8[1024]{0}', space=vmem, size = 0x400, scoped, tag = 'output window, operand 1, single buffered']
    #allocation5 [shape = 's32[1]{0}', space=sflag, size = 0x4, scoped, tag = 'scoped memory for ipirm_from_image.1']
    %15 = vsyncpa [#allocation3], 0
    %16 = vsyncpa [#allocation5], 0
    // Predicated region
    $region2: #{ipirm_from_image.1} parent=1 // pred_check
      _
    $region3: #{ipirm_from_image.1} parent=1 // pred_check_branch
      %18 = sbr.rel (0) target = $region5
    $region4: #{ipirm_from_image.1} parent=1 // pred_region
      _
    $region5: #{ipirm_from_image.1} parent=1 // pred_fallthru
      _
    // Predicated region
    $region6: #{ipirm_from_image.1} parent=1 // pred_check
      _
    $region7: #{ipirm_from_image.1} parent=1 // pred_check_branch
      %20 = sbr.rel (0) target = $region9
    $region8: #{ipirm_from_image.1} parent=1 // pred_region
      _
    $region9: #{ipirm_from_image.1} parent=1 // pred_fallthru
      _
    // Predicated region
    $region10: #{ipirm_from_image.1} parent=1 // pred_check
      _
    $region11: #{ipirm_from_image.1} parent=1 // pred_check_branch
      %22 = sbr.rel (0) target = $region13
    $region12: #{ipirm_from_image.1} parent=1 // pred_region
      _
    $region13: #{ipirm_from_image.1} parent=1 // pred_fallthru
      _
    // Predicated region
    $region14: #{ipirm_from_image.1} parent=1 // pred_check
      _
    $region15: #{ipirm_from_image.1} parent=1 // pred_check_branch
      %24 = sbr.rel (0) target = $region17
    $region16: #{ipirm_from_image.1} parent=1 // pred_region
      _
    $region17: #{ipirm_from_image.1} parent=1 // pred_fallthru
      _
    // Predicated region
    $region18: #{ipirm_from_image.1} parent=1 // pred_check
      _
    $region19: #{ipirm_from_image.1} parent=1 // pred_check_branch
      %26 = sbr.rel (0) target = $region21
    $region20: #{ipirm_from_image.1} parent=1 // pred_region
      _
    $region21: #{ipirm_from_image.1} parent=1 // pred_fallthru
      _
    // Predicated region
    $region22: #{ipirm_from_image.1} parent=1 // pred_check
      _
    $region23: #{ipirm_from_image.1} parent=1 // pred_check_branch
      %28 = sbr.rel (0) target = $region25
    $region24: #{ipirm_from_image.1} parent=1 // pred_region
      _
    $region25: #{ipirm_from_image.1} parent=1 // pred_fallthru
      _
    // Predicated region
    $region26: #{ipirm_from_image.1} parent=1 // pred_check
      _
    $region27: #{ipirm_from_image.1} parent=1 // pred_check_branch
      %30 = sbr.rel (0) target = $region29
    $region28: #{ipirm_from_image.1} parent=1 // pred_region
      _
    $region29: #{ipirm_from_image.1} parent=1 // pred_fallthru
      _
    // Predicated region
    $region30: #{ipirm_from_image.1} parent=1 // pred_check
      _
    $region31: #{ipirm_from_image.1} parent=1 // pred_check_branch
      %32 = sbr.rel (0) target = $region33
    $region32: #{ipirm_from_image.1} parent=1 // pred_region
      _
    $region33: #{ipirm_from_image.1} parent=1 // pred_fallthru
      _
    %v34 = vld [vmem:[%s0] sm:$0xf]
    %v35 = vld [vmem:[%s0 + $0x4] sm:$0xf]
    %v36 = vld [vmem:[%s0 + $0x8] sm:$0xf]
    %v37 = vld [vmem:[%s0 + $0xc] sm:$0xf]
    %v38 = vld [vmem:[%s0 + $0x10] sm:$0xf]
    %v39 = vld [vmem:[%s0 + $0x14] sm:$0xf]
    %v40 = vld [vmem:[%s0 + $0x18] sm:$0xf]
    %v41 = vld [vmem:[%s0 + $0x1c] sm:$0xf]
    %v42 = vld [vmem:[%s0 + $0x20] sm:$0xf]
    %v43 = vld [vmem:[%s0 + $0x24] sm:$0xf]
    %v44 = vld [vmem:[%s0 + $0x28] sm:$0xf]
    %v45 = vld [vmem:[%s0 + $0x2c] sm:$0xf]
    %v46 = vld [vmem:[%s0 + $0x30] sm:$0xf]
    %v47 = vld [vmem:[%s0 + $0x34] sm:$0xf]
    %v48 = vld [vmem:[%s0 + $0x38] sm:$0xf]
    %v49 = vld [vmem:[%s0 + $0x3c] sm:$0xf]
    %v50 = vld [vmem:[%s0 + $0x40] sm:$0xf]
    %v51 = vld [vmem:[%s0 + $0x44] sm:$0xf]
    %v52 = vld [vmem:[%s0 + $0x48] sm:$0xf]
    %v53 = vld [vmem:[%s0 + $0x4c] sm:$0xf]
    %v54 = vld [vmem:[%s0 + $0x50] sm:$0xf]
    %v55 = vld [vmem:[%s0 + $0x54] sm:$0xf]
    %v56 = vld [vmem:[%s0 + $0x58] sm:$0xf]
    %v57 = vld [vmem:[%s0 + $0x5c] sm:$0xf]
    %v58 = vld [vmem:[%s0 + $0x60] sm:$0xf]
    %v59 = vld [vmem:[%s0 + $0x64] sm:$0xf]
    %v60 = vld [vmem:[%s0 + $0x68] sm:$0xf]
    %v61 = vld [vmem:[%s0 + $0x6c] sm:$0xf]
    %v62 = vld [vmem:[%s0 + $0x70] sm:$0xf]
    %v63 = vld [vmem:[%s0 + $0x74] sm:$0xf]
    %v64 = vld [vmem:[%s0 + $0x78] sm:$0xf]
    %v65 = vld [vmem:[%s0 + $0x7c] sm:$0xf]
    %v66 = vld [vmem:[%s0 + $0x80] sm:$0xf]
    %v67 = vld [vmem:[%s0 + $0x84] sm:$0xf]
    %v68 = vld [vmem:[%s0 + $0x88] sm:$0xf]
    %v69 = vld [vmem:[%s0 + $0x8c] sm:$0xf]
    %v70 = vld [vmem:[%s0 + $0x90] sm:$0xf]
    %v71 = vld [vmem:[%s0 + $0x94] sm:$0xf]
    %v72 = vld [vmem:[%s0 + $0x98] sm:$0xf]
    %v73 = vld [vmem:[%s0 + $0x9c] sm:$0xf]
    %v74 = vld [vmem:[%s0 + $0xa0] sm:$0xf]
    %v75 = vld [vmem:[%s0 + $0xa4] sm:$0xf]
    %v76 = vld [vmem:[%s0 + $0xa8] sm:$0xf]
    %v77 = vld [vmem:[%s0 + $0xac] sm:$0xf]
    %v78 = vld [vmem:[%s0 + $0xb0] sm:$0xf]
    %v79 = vld [vmem:[%s0 + $0xb4] sm:$0xf]
    %v80 = vld [vmem:[%s0 + $0xb8] sm:$0xf]
    %v81 = vld [vmem:[%s0 + $0xbc] sm:$0xf]
    %v82 = vld [vmem:[%s0 + $0xc0] sm:$0xf]
    %v83 = vld [vmem:[%s0 + $0xc4] sm:$0xf]
    %v84 = vld [vmem:[%s0 + $0xc8] sm:$0xf]
    %v85 = vld [vmem:[%s0 + $0xcc] sm:$0xf]
    %v86 = vld [vmem:[%s0 + $0xd0] sm:$0xf]
    %v87 = vld [vmem:[%s0 + $0xd4] sm:$0xf]
    %v88 = vld [vmem:[%s0 + $0xd8] sm:$0xf]
    %v89 = vld [vmem:[%s0 + $0xdc] sm:$0xf]
    %v90 = vld [vmem:[%s0 + $0xe0] sm:$0xf]
    %v91 = vld [vmem:[%s0 + $0xe4] sm:$0xf]
    %v92 = vld [vmem:[%s0 + $0xe8] sm:$0xf]
    %v93 = vld [vmem:[%s0 + $0xec] sm:$0xf]
    %v94 = vld [vmem:[%s0 + $0xf0] sm:$0xf]
    %v95 = vld [vmem:[%s0 + $0xf4] sm:$0xf]
    %v96 = vld [vmem:[%s0 + $0xf8] sm:$0xf]
    %v97 = vld [vmem:[%s0 + $0xfc] sm:$0xf]
    %v98 = vld [vmem:[%s1] sm:$0xff]
    %v99 = vld [vmem:[%s1 + $0x8] sm:$0xff]
    %v100 = vld [vmem:[%s1 + $0x10] sm:$0xff]
    %v101 = vld [vmem:[%s1 + $0x18] sm:$0xff]
    %v102 = vld [vmem:[%s1 + $0x20] sm:$0xff]
    %v103 = vld [vmem:[%s1 + $0x28] sm:$0xff]
    %v104 = vld [vmem:[%s1 + $0x30] sm:$0xff]
    %v105 = vld [vmem:[%s1 + $0x38] sm:$0xff]
    %v170 = vunpack.c.l.b16 %v34
    %v171 = vunpack.c.l.b16 %v35
    %v172 = vunpack.c.l.b16 %v36
    %v173 = vunpack.c.l.b16 %v37
    %v174 = vunpack.c.l.b16 %v38
    %v175 = vunpack.c.l.b16 %v39
    %v176 = vunpack.c.l.b16 %v40
    %v177 = vunpack.c.l.b16 %v41
    %v178 = vunpack.c.l.b16 %v42
    %v179 = vunpack.c.l.b16 %v43
    %v180 = vunpack.c.l.b16 %v44
    %v181 = vunpack.c.l.b16 %v45
    %v182 = vunpack.c.l.b16 %v46
    %v183 = vunpack.c.l.b16 %v47
    %v184 = vunpack.c.l.b16 %v48
    %v185 = vunpack.c.l.b16 %v49
    %v186 = vunpack.c.l.b16 %v50
    %v187 = vunpack.c.l.b16 %v51
    %v188 = vunpack.c.l.b16 %v52
    %v189 = vunpack.c.l.b16 %v53
    %v190 = vunpack.c.l.b16 %v54
    %v191 = vunpack.c.l.b16 %v55
    %v192 = vunpack.c.l.b16 %v56
    %v193 = vunpack.c.l.b16 %v57
    %v194 = vunpack.c.l.b16 %v58
    %v195 = vunpack.c.l.b16 %v59
    %v196 = vunpack.c.l.b16 %v60
    %v197 = vunpack.c.l.b16 %v61
    %v198 = vunpack.c.l.b16 %v62
    %v199 = vunpack.c.l.b16 %v63
    %v200 = vunpack.c.l.b16 %v64
    %v201 = vunpack.c.l.b16 %v65
    %v202 = vunpack.c.l.b16 %v66
    %v203 = vunpack.c.l.b16 %v67
    %v204 = vunpack.c.l.b16 %v68
    %v205 = vunpack.c.l.b16 %v69
    %v206 = vunpack.c.l.b16 %v70
    %v207 = vunpack.c.l.b16 %v71
    %v208 = vunpack.c.l.b16 %v72
    %v209 = vunpack.c.l.b16 %v73
    %v210 = vunpack.c.l.b16 %v74
    %v211 = vunpack.c.l.b16 %v75
    %v212 = vunpack.c.l.b16 %v76
    %v213 = vunpack.c.l.b16 %v77
    %v214 = vunpack.c.l.b16 %v78
    %v215 = vunpack.c.l.b16 %v79
    %v216 = vunpack.c.l.b16 %v80
    %v217 = vunpack.c.l.b16 %v81
    %v218 = vunpack.c.l.b16 %v82
    %v219 = vunpack.c.l.b16 %v83
    %v220 = vunpack.c.l.b16 %v84
    %v221 = vunpack.c.l.b16 %v85
    %v222 = vunpack.c.l.b16 %v86
    %v223 = vunpack.c.l.b16 %v87
    %v224 = vunpack.c.l.b16 %v88
    %v225 = vunpack.c.l.b16 %v89
    %v226 = vunpack.c.l.b16 %v90
    %v227 = vunpack.c.l.b16 %v91
    %v228 = vunpack.c.l.b16 %v92
    %v229 = vunpack.c.l.b16 %v93
    %v230 = vunpack.c.l.b16 %v94
    %v231 = vunpack.c.l.b16 %v95
    %v232 = vunpack.c.l.b16 %v96
    %v233 = vunpack.c.l.b16 %v97
    %v234 = vpack.c.b16 %v171, %v170
    %v235 = vpack.c.b16 %v173, %v172
    %v236 = vpack.c.b16 %v175, %v174
    %v237 = vpack.c.b16 %v177, %v176
    %v238 = vpack.c.b16 %v179, %v178
    %v239 = vpack.c.b16 %v181, %v180
    %v240 = vpack.c.b16 %v183, %v182
    %v241 = vpack.c.b16 %v185, %v184
    %v242 = vpack.c.b16 %v187, %v186
    %v243 = vpack.c.b16 %v189, %v188
    %v244 = vpack.c.b16 %v191, %v190
    %v245 = vpack.c.b16 %v193, %v192
    %v246 = vpack.c.b16 %v195, %v194
    %v247 = vpack.c.b16 %v197, %v196
    %v248 = vpack.c.b16 %v199, %v198
    %v249 = vpack.c.b16 %v201, %v200
    %v250 = vpack.c.b16 %v203, %v202
    %v251 = vpack.c.b16 %v205, %v204
    %v252 = vpack.c.b16 %v207, %v206
    %v253 = vpack.c.b16 %v209, %v208
    %v254 = vpack.c.b16 %v211, %v210
    %v255 = vpack.c.b16 %v213, %v212
    %v256 = vpack.c.b16 %v215, %v214
    %v257 = vpack.c.b16 %v217, %v216
    %v258 = vpack.c.b16 %v219, %v218
    %v259 = vpack.c.b16 %v221, %v220
    %v260 = vpack.c.b16 %v223, %v222
    %v261 = vpack.c.b16 %v225, %v224
    %v262 = vpack.c.b16 %v227, %v226
    %v263 = vpack.c.b16 %v229, %v228
    %v264 = vpack.c.b16 %v231, %v230
    %v265 = vpack.c.b16 %v233, %v232
    %v274 = vunpack.c.l.b16 %v98
    %v275 = vunpack.c.h.b16 %v98
    %v276 = vunpack.c.l.b16 %v99
    %v277 = vunpack.c.h.b16 %v99
    %v278 = vunpack.c.l.b16 %v100
    %v279 = vunpack.c.h.b16 %v100
    %v280 = vunpack.c.l.b16 %v101
    %v281 = vunpack.c.h.b16 %v101
    %v282 = vunpack.c.l.b16 %v102
    %v283 = vunpack.c.h.b16 %v102
    %v284 = vunpack.c.l.b16 %v103
    %v285 = vunpack.c.h.b16 %v103
    %v286 = vunpack.c.l.b16 %v104
    %v287 = vunpack.c.h.b16 %v104
    %v288 = vunpack.c.l.b16 %v105
    %v289 = vunpack.c.h.b16 %v105
    %v290 = vpack.c.b16 %v278, %v274
    %v291 = vpack.c.b16 %v279, %v275
    %v292 = vpack.c.b16 %v280, %v276
    %v293 = vpack.c.b16 %v281, %v277
    %v294 = vpack.c.b16 %v286, %v282
    %v295 = vpack.c.b16 %v287, %v283
    %v296 = vpack.c.b16 %v288, %v284
    %v297 = vpack.c.b16 %v289, %v285
    %vm306 = vcmask 261120
    %v308 = vsel %vm306, %v234, 0
    %v311 = vsel %vm306, %v235, 0
    %v314 = vsel %vm306, %v236, 0
    %v317 = vsel %vm306, %v237, 0
    %v320 = vsel %vm306, %v238, 0
    %v323 = vsel %vm306, %v239, 0
    %v326 = vsel %vm306, %v240, 0
    %v329 = vsel %vm306, %v241, 0
    %v332 = vsel %vm306, %v242, 0
    %v335 = vsel %vm306, %v243, 0
    %v338 = vsel %vm306, %v244, 0
    %v341 = vsel %vm306, %v245, 0
    %v344 = vsel %vm306, %v246, 0
    %v347 = vsel %vm306, %v247, 0
    %v350 = vsel %vm306, %v248, 0
    %v353 = vsel %vm306, %v249, 0
    %v356 = vsel %vm306, %v250, 0
    %v359 = vsel %vm306, %v251, 0
    %v362 = vsel %vm306, %v252, 0
    %v365 = vsel %vm306, %v253, 0
    %v368 = vsel %vm306, %v254, 0
    %v371 = vsel %vm306, %v255, 0
    %v374 = vsel %vm306, %v256, 0
    %v377 = vsel %vm306, %v257, 0
    %v380 = vsel %vm306, %v258, 0
    %v383 = vsel %vm306, %v259, 0
    %v386 = vsel %vm306, %v260, 0
    %v389 = vsel %vm306, %v261, 0
    %v392 = vsel %vm306, %v262, 0
    %v395 = vsel %vm306, %v263, 0
    %v398 = vsel %vm306, %v264, 0
    %v401 = vsel %vm306, %v265, 0
    %403 = vmatprep.subr.bf16.mxu0 %v291
    %404 = vmatpush1.bf16.msra.mxu0 %v290
    %405 = vmatprep.subr.bf16.mxu0 %v295
    %406 = vmatpush1.bf16.msra.mxu0 %v294
    %407 = vmatprep.subr.bf16.mxu0 0
    %408 = vmatpush1.bf16.msra.mxu0 0
    %409 = vmatprep.subr.bf16.mxu0 0
    %410 = vmatpush1.bf16.msra.mxu0 0
    %411 = vmatprep.subr.bf16.mxu0 0
    %412 = vmatpush1.bf16.msra.mxu0 0
    %413 = vmatprep.subr.bf16.mxu0 0
    %414 = vmatpush1.bf16.msra.mxu0 0
    %415 = vmatprep.subr.bf16.mxu0 0
    %416 = vmatpush1.bf16.msra.mxu0 0
    %417 = vmatprep.subr.bf16.mxu0 0
    %418 = vmatpush1.bf16.msra.mxu0 0
    %419 = vmatprep.subr.bf16.mxu0 0
    %420 = vmatpush1.bf16.msra.mxu0 0
    %421 = vmatprep.subr.bf16.mxu0 0
    %422 = vmatpush1.bf16.msra.mxu0 0
    %423 = vmatprep.subr.bf16.mxu0 0
    %424 = vmatpush1.bf16.msra.mxu0 0
    %425 = vmatprep.subr.bf16.mxu0 0
    %426 = vmatpush1.bf16.msra.mxu0 0
    %427 = vmatprep.subr.bf16.mxu0 0
    %428 = vmatpush1.bf16.msra.mxu0 0
    %429 = vmatprep.subr.bf16.mxu0 0
    %430 = vmatpush1.bf16.msra.mxu0 0
    %431 = vmatprep.subr.bf16.mxu0 0
    %432 = vmatpush1.bf16.msra.mxu0 0
    %433 = vmatprep.subr.bf16.mxu0 0
    %434 = vmatpush1.bf16.msra.mxu0 0
    %435 = vmatprep.mubr.bf16.mxu0 0
    %436 = vmatmul.mubr.bf16.gmra.mrb[0].mxu0 %v308
    %v437 = vpop.f32.mrb[0].mxu0
    %v438 = vadd.f32 0.0, %v437
    %v439 = vpop.f32.mrb[0].mxu0
    %v440 = vadd.f32 0.0, %v439
    %v441 = vpop.f32.mrb[0].mxu0
    %v442 = vadd.f32 0.0, %v441
    %v443 = vpop.f32.mrb[0].mxu0
    %v444 = vadd.f32 0.0, %v443
    %445 = vmatprep.mubr.bf16.mxu0 0
    %446 = vmatmul.mubr.bf16.gmra.mrb[0].mxu0 %v311
    %v447 = vpop.f32.mrb[0].mxu0
    %v448 = vadd.f32 0.0, %v447
    %v449 = vpop.f32.mrb[0].mxu0
    %v450 = vadd.f32 0.0, %v449
    %v451 = vpop.f32.mrb[0].mxu0
    %v452 = vadd.f32 0.0, %v451
    %v453 = vpop.f32.mrb[0].mxu0
    %v454 = vadd.f32 0.0, %v453
    %455 = vmatprep.mubr.bf16.mxu0 0
    %456 = vmatmul.mubr.bf16.gmra.mrb[0].mxu0 %v314
    %v457 = vpop.f32.mrb[0].mxu0
    %v458 = vadd.f32 0.0, %v457
    %v459 = vpop.f32.mrb[0].mxu0
    %v460 = vadd.f32 0.0, %v459
    %v461 = vpop.f32.mrb[0].mxu0
    %v462 = vadd.f32 0.0, %v461
    %v463 = vpop.f32.mrb[0].mxu0
    %v464 = vadd.f32 0.0, %v463
    %465 = vmatprep.mubr.bf16.mxu0 0
    %466 = vmatmul.mubr.bf16.gmra.mrb[0].mxu0 %v317
    %v467 = vpop.f32.mrb[0].mxu0
    %v468 = vadd.f32 0.0, %v467
    %v469 = vpop.f32.mrb[0].mxu0
    %v470 = vadd.f32 0.0, %v469
    %v471 = vpop.f32.mrb[0].mxu0
    %v472 = vadd.f32 0.0, %v471
    %v473 = vpop.f32.mrb[0].mxu0
    %v474 = vadd.f32 0.0, %v473
    %475 = vmatprep.mubr.bf16.mxu0 0
    %476 = vmatmul.mubr.bf16.gmra.mrb[0].mxu0 %v320
    %v477 = vpop.f32.mrb[0].mxu0
    %v478 = vadd.f32 0.0, %v477
    %v479 = vpop.f32.mrb[0].mxu0
    %v480 = vadd.f32 0.0, %v479
    %v481 = vpop.f32.mrb[0].mxu0
    %v482 = vadd.f32 0.0, %v481
    %v483 = vpop.f32.mrb[0].mxu0
    %v484 = vadd.f32 0.0, %v483
    %485 = vmatprep.mubr.bf16.mxu0 0
    %486 = vmatmul.mubr.bf16.gmra.mrb[0].mxu0 %v323
    %v487 = vpop.f32.mrb[0].mxu0
    %v488 = vadd.f32 0.0, %v487
    %v489 = vpop.f32.mrb[0].mxu0
    %v490 = vadd.f32 0.0, %v489
    %v491 = vpop.f32.mrb[0].mxu0
    %v492 = vadd.f32 0.0, %v491
    %v493 = vpop.f32.mrb[0].mxu0
    %v494 = vadd.f32 0.0, %v493
    %495 = vmatprep.mubr.bf16.mxu0 0
    %496 = vmatmul.mubr.bf16.gmra.mrb[0].mxu0 %v326
    %v497 = vpop.f32.mrb[0].mxu0
    %v498 = vadd.f32 0.0, %v497
    %v499 = vpop.f32.mrb[0].mxu0
    %v500 = vadd.f32 0.0, %v499
    %v501 = vpop.f32.mrb[0].mxu0
    %v502 = vadd.f32 0.0, %v501
    %v503 = vpop.f32.mrb[0].mxu0
    %v504 = vadd.f32 0.0, %v503
    %505 = vmatprep.mubr.bf16.mxu0 0
    %506 = vmatmul.mubr.bf16.gmra.mrb[0].mxu0 %v329
    %v507 = vpop.f32.mrb[0].mxu0
    %v508 = vadd.f32 0.0, %v507
    %v509 = vpop.f32.mrb[0].mxu0
    %v510 = vadd.f32 0.0, %v509
    %v511 = vpop.f32.mrb[0].mxu0
    %v512 = vadd.f32 0.0, %v511
    %v513 = vpop.f32.mrb[0].mxu0
    %v514 = vadd.f32 0.0, %v513
    %515 = vmatprep.mubr.bf16.mxu0 0
    %516 = vmatmul.mubr.bf16.gmra.mrb[0].mxu0 %v332
    %v517 = vpop.f32.mrb[0].mxu0
    %v518 = vadd.f32 0.0, %v517
    %v519 = vpop.f32.mrb[0].mxu0
    %v520 = vadd.f32 0.0, %v519
    %v521 = vpop.f32.mrb[0].mxu0
    %v522 = vadd.f32 0.0, %v521
    %v523 = vpop.f32.mrb[0].mxu0
    %v524 = vadd.f32 0.0, %v523
    %525 = vmatprep.mubr.bf16.mxu0 0
    %526 = vmatmul.mubr.bf16.gmra.mrb[0].mxu0 %v335
    %v527 = vpop.f32.mrb[0].mxu0
    %v528 = vadd.f32 0.0, %v527
    %v529 = vpop.f32.mrb[0].mxu0
    %v530 = vadd.f32 0.0, %v529
    %v531 = vpop.f32.mrb[0].mxu0
    %v532 = vadd.f32 0.0, %v531
    %v533 = vpop.f32.mrb[0].mxu0
    %v534 = vadd.f32 0.0, %v533
    %535 = vmatprep.mubr.bf16.mxu0 0
    %536 = vmatmul.mubr.bf16.gmra.mrb[0].mxu0 %v338
    %v537 = vpop.f32.mrb[0].mxu0
    %v538 = vadd.f32 0.0, %v537
    %v539 = vpop.f32.mrb[0].mxu0
    %v540 = vadd.f32 0.0, %v539
    %v541 = vpop.f32.mrb[0].mxu0
    %v542 = vadd.f32 0.0, %v541
    %v543 = vpop.f32.mrb[0].mxu0
    %v544 = vadd.f32 0.0, %v543
    %545 = vmatprep.mubr.bf16.mxu0 0
    %546 = vmatmul.mubr.bf16.gmra.mrb[0].mxu0 %v341
    %v547 = vpop.f32.mrb[0].mxu0
    %v548 = vadd.f32 0.0, %v547
    %v549 = vpop.f32.mrb[0].mxu0
    %v550 = vadd.f32 0.0, %v549
    %v551 = vpop.f32.mrb[0].mxu0
    %v552 = vadd.f32 0.0, %v551
    %v553 = vpop.f32.mrb[0].mxu0
    %v554 = vadd.f32 0.0, %v553
    %555 = vmatprep.mubr.bf16.mxu0 0
    %556 = vmatmul.mubr.bf16.gmra.mrb[0].mxu0 %v344
    %v557 = vpop.f32.mrb[0].mxu0
    %v558 = vadd.f32 0.0, %v557
    %v559 = vpop.f32.mrb[0].mxu0
    %v560 = vadd.f32 0.0, %v559
    %v561 = vpop.f32.mrb[0].mxu0
    %v562 = vadd.f32 0.0, %v561
    %v563 = vpop.f32.mrb[0].mxu0
    %v564 = vadd.f32 0.0, %v563
    %565 = vmatprep.mubr.bf16.mxu0 0
    %566 = vmatmul.mubr.bf16.gmra.mrb[0].mxu0 %v347
    %v567 = vpop.f32.mrb[0].mxu0
    %v568 = vadd.f32 0.0, %v567
    %v569 = vpop.f32.mrb[0].mxu0
    %v570 = vadd.f32 0.0, %v569
    %v571 = vpop.f32.mrb[0].mxu0
    %v572 = vadd.f32 0.0, %v571
    %v573 = vpop.f32.mrb[0].mxu0
    %v574 = vadd.f32 0.0, %v573
    %575 = vmatprep.mubr.bf16.mxu0 0
    %576 = vmatmul.mubr.bf16.gmra.mrb[0].mxu0 %v350
    %v577 = vpop.f32.mrb[0].mxu0
    %v578 = vadd.f32 0.0, %v577
    %v579 = vpop.f32.mrb[0].mxu0
    %v580 = vadd.f32 0.0, %v579
    %v581 = vpop.f32.mrb[0].mxu0
    %v582 = vadd.f32 0.0, %v581
    %v583 = vpop.f32.mrb[0].mxu0
    %v584 = vadd.f32 0.0, %v583
    %585 = vmatprep.mubr.bf16.mxu0 0
    %586 = vmatmul.mubr.bf16.gmra.mrb[0].mxu0 %v353
    %v587 = vpop.f32.mrb[0].mxu0
    %v588 = vadd.f32 0.0, %v587
    %v589 = vpop.f32.mrb[0].mxu0
    %v590 = vadd.f32 0.0, %v589
    %v591 = vpop.f32.mrb[0].mxu0
    %v592 = vadd.f32 0.0, %v591
    %v593 = vpop.f32.mrb[0].mxu0
    %v594 = vadd.f32 0.0, %v593
    %595 = vmatprep.mubr.bf16.mxu0 0
    %596 = vmatmul.mubr.bf16.gmra.mrb[0].mxu0 %v356
    %v597 = vpop.f32.mrb[0].mxu0
    %v598 = vadd.f32 0.0, %v597
    %v599 = vpop.f32.mrb[0].mxu0
    %v600 = vadd.f32 0.0, %v599
    %v601 = vpop.f32.mrb[0].mxu0
    %v602 = vadd.f32 0.0, %v601
    %v603 = vpop.f32.mrb[0].mxu0
    %v604 = vadd.f32 0.0, %v603
    %605 = vmatprep.mubr.bf16.mxu0 0
    %606 = vmatmul.mubr.bf16.gmra.mrb[0].mxu0 %v359
    %v607 = vpop.f32.mrb[0].mxu0
    %v608 = vadd.f32 0.0, %v607
    %v609 = vpop.f32.mrb[0].mxu0
    %v610 = vadd.f32 0.0, %v609
    %v611 = vpop.f32.mrb[0].mxu0
    %v612 = vadd.f32 0.0, %v611
    %v613 = vpop.f32.mrb[0].mxu0
    %v614 = vadd.f32 0.0, %v613
    %615 = vmatprep.mubr.bf16.mxu0 0
    %616 = vmatmul.mubr.bf16.gmra.mrb[0].mxu0 %v362
    %v617 = vpop.f32.mrb[0].mxu0
    %v618 = vadd.f32 0.0, %v617
    %v619 = vpop.f32.mrb[0].mxu0
    %v620 = vadd.f32 0.0, %v619
    %v621 = vpop.f32.mrb[0].mxu0
    %v622 = vadd.f32 0.0, %v621
    %v623 = vpop.f32.mrb[0].mxu0
    %v624 = vadd.f32 0.0, %v623
    %625 = vmatprep.mubr.bf16.mxu0 0
    %626 = vmatmul.mubr.bf16.gmra.mrb[0].mxu0 %v365
    %v627 = vpop.f32.mrb[0].mxu0
    %v628 = vadd.f32 0.0, %v627
    %v629 = vpop.f32.mrb[0].mxu0
    %v630 = vadd.f32 0.0, %v629
    %v631 = vpop.f32.mrb[0].mxu0
    %v632 = vadd.f32 0.0, %v631
    %v633 = vpop.f32.mrb[0].mxu0
    %v634 = vadd.f32 0.0, %v633
    %635 = vmatprep.mubr.bf16.mxu0 0
    %636 = vmatmul.mubr.bf16.gmra.mrb[0].mxu0 %v368
    %v637 = vpop.f32.mrb[0].mxu0
    %v638 = vadd.f32 0.0, %v637
    %v639 = vpop.f32.mrb[0].mxu0
    %v640 = vadd.f32 0.0, %v639
    %v641 = vpop.f32.mrb[0].mxu0
    %v642 = vadd.f32 0.0, %v641
    %v643 = vpop.f32.mrb[0].mxu0
    %v644 = vadd.f32 0.0, %v643
    %645 = vmatprep.mubr.bf16.mxu0 0
    %646 = vmatmul.mubr.bf16.gmra.mrb[0].mxu0 %v371
    %v647 = vpop.f32.mrb[0].mxu0
    %v648 = vadd.f32 0.0, %v647
    %v649 = vpop.f32.mrb[0].mxu0
    %v650 = vadd.f32 0.0, %v649
    %v651 = vpop.f32.mrb[0].mxu0
    %v652 = vadd.f32 0.0, %v651
    %v653 = vpop.f32.mrb[0].mxu0
    %v654 = vadd.f32 0.0, %v653
    %655 = vmatprep.mubr.bf16.mxu0 0
    %656 = vmatmul.mubr.bf16.gmra.mrb[0].mxu0 %v374
    %v657 = vpop.f32.mrb[0].mxu0
    %v658 = vadd.f32 0.0, %v657
    %v659 = vpop.f32.mrb[0].mxu0
    %v660 = vadd.f32 0.0, %v659
    %v661 = vpop.f32.mrb[0].mxu0
    %v662 = vadd.f32 0.0, %v661
    %v663 = vpop.f32.mrb[0].mxu0
    %v664 = vadd.f32 0.0, %v663
    %665 = vmatprep.mubr.bf16.mxu0 0
    %666 = vmatmul.mubr.bf16.gmra.mrb[0].mxu0 %v377
    %v667 = vpop.f32.mrb[0].mxu0
    %v668 = vadd.f32 0.0, %v667
    %v669 = vpop.f32.mrb[0].mxu0
    %v670 = vadd.f32 0.0, %v669
    %v671 = vpop.f32.mrb[0].mxu0
    %v672 = vadd.f32 0.0, %v671
    %v673 = vpop.f32.mrb[0].mxu0
    %v674 = vadd.f32 0.0, %v673
    %675 = vmatprep.mubr.bf16.mxu0 0
    %676 = vmatmul.mubr.bf16.gmra.mrb[0].mxu0 %v380
    %v677 = vpop.f32.mrb[0].mxu0
    %v678 = vadd.f32 0.0, %v677
    %v679 = vpop.f32.mrb[0].mxu0
    %v680 = vadd.f32 0.0, %v679
    %v681 = vpop.f32.mrb[0].mxu0
    %v682 = vadd.f32 0.0, %v681
    %v683 = vpop.f32.mrb[0].mxu0
    %v684 = vadd.f32 0.0, %v683
    %685 = vmatprep.mubr.bf16.mxu0 0
    %686 = vmatmul.mubr.bf16.gmra.mrb[0].mxu0 %v383
    %v687 = vpop.f32.mrb[0].mxu0
    %v688 = vadd.f32 0.0, %v687
    %v689 = vpop.f32.mrb[0].mxu0
    %v690 = vadd.f32 0.0, %v689
    %v691 = vpop.f32.mrb[0].mxu0
    %v692 = vadd.f32 0.0, %v691
    %v693 = vpop.f32.mrb[0].mxu0
    %v694 = vadd.f32 0.0, %v693
    %695 = vmatprep.mubr.bf16.mxu0 0
    %696 = vmatmul.mubr.bf16.gmra.mrb[0].mxu0 %v386
    %v697 = vpop.f32.mrb[0].mxu0
    %v698 = vadd.f32 0.0, %v697
    %v699 = vpop.f32.mrb[0].mxu0
    %v700 = vadd.f32 0.0, %v699
    %v701 = vpop.f32.mrb[0].mxu0
    %v702 = vadd.f32 0.0, %v701
    %v703 = vpop.f32.mrb[0].mxu0
    %v704 = vadd.f32 0.0, %v703
    %705 = vmatprep.mubr.bf16.mxu0 0
    %706 = vmatmul.mubr.bf16.gmra.mrb[0].mxu0 %v389
    %v707 = vpop.f32.mrb[0].mxu0
    %v708 = vadd.f32 0.0, %v707
    %v709 = vpop.f32.mrb[0].mxu0
    %v710 = vadd.f32 0.0, %v709
    %v711 = vpop.f32.mrb[0].mxu0
    %v712 = vadd.f32 0.0, %v711
    %v713 = vpop.f32.mrb[0].mxu0
    %v714 = vadd.f32 0.0, %v713
    %715 = vmatprep.mubr.bf16.mxu0 0
    %716 = vmatmul.mubr.bf16.gmra.mrb[0].mxu0 %v392
    %v717 = vpop.f32.mrb[0].mxu0
    %v718 = vadd.f32 0.0, %v717
    %v719 = vpop.f32.mrb[0].mxu0
    %v720 = vadd.f32 0.0, %v719
    %v721 = vpop.f32.mrb[0].mxu0
    %v722 = vadd.f32 0.0, %v721
    %v723 = vpop.f32.mrb[0].mxu0
    %v724 = vadd.f32 0.0, %v723
    %725 = vmatprep.mubr.bf16.mxu0 0
    %726 = vmatmul.mubr.bf16.gmra.mrb[0].mxu0 %v395
    %v727 = vpop.f32.mrb[0].mxu0
    %v728 = vadd.f32 0.0, %v727
    %v729 = vpop.f32.mrb[0].mxu0
    %v730 = vadd.f32 0.0, %v729
    %v731 = vpop.f32.mrb[0].mxu0
    %v732 = vadd.f32 0.0, %v731
    %v733 = vpop.f32.mrb[0].mxu0
    %v734 = vadd.f32 0.0, %v733
    %735 = vmatprep.mubr.bf16.mxu0 0
    %736 = vmatmul.mubr.bf16.gmra.mrb[0].mxu0 %v398
    %v737 = vpop.f32.mrb[0].mxu0
    %v738 = vadd.f32 0.0, %v737
    %v739 = vpop.f32.mrb[0].mxu0
    %v740 = vadd.f32 0.0, %v739
    %v741 = vpop.f32.mrb[0].mxu0
    %v742 = vadd.f32 0.0, %v741
    %v743 = vpop.f32.mrb[0].mxu0
    %v744 = vadd.f32 0.0, %v743
    %745 = vmatprep.mubr.bf16.mxu0 0
    %746 = vmatmul.mubr.bf16.gmra.mrb[0].mxu0 %v401
    %v747 = vpop.f32.mrb[0].mxu0
    %v748 = vadd.f32 0.0, %v747
    %v749 = vpop.f32.mrb[0].mxu0
    %v750 = vadd.f32 0.0, %v749
    %v751 = vpop.f32.mrb[0].mxu0
    %v752 = vadd.f32 0.0, %v751
    %v753 = vpop.f32.mrb[0].mxu0
    %v754 = vadd.f32 0.0, %v753
    %755 = vdwg.mxu0
    %756 = vmatprep.subr.bf16.mxu0 %v293
    %757 = vmatpush1.bf16.msra.mxu0 %v292
    %758 = vmatprep.subr.bf16.mxu0 %v297
    %759 = vmatpush1.bf16.msra.mxu0 %v296
    %760 = vmatprep.subr.bf16.mxu0 0
    %761 = vmatpush1.bf16.msra.mxu0 0
    %762 = vmatprep.subr.bf16.mxu0 0
    %763 = vmatpush1.bf16.msra.mxu0 0
    %764 = vmatprep.subr.bf16.mxu0 0
    %765 = vmatpush1.bf16.msra.mxu0 0
    %766 = vmatprep.subr.bf16.mxu0 0
    %767 = vmatpush1.bf16.msra.mxu0 0
    %768 = vmatprep.subr.bf16.mxu0 0
    %769 = vmatpush1.bf16.msra.mxu0 0
    %770 = vmatprep.subr.bf16.mxu0 0
    %771 = vmatpush1.bf16.msra.mxu0 0
    %772 = vmatprep.subr.bf16.mxu0 0
    %773 = vmatpush1.bf16.msra.mxu0 0
    %774 = vmatprep.subr.bf16.mxu0 0
    %775 = vmatpush1.bf16.msra.mxu0 0
    %776 = vmatprep.subr.bf16.mxu0 0
    %777 = vmatpush1.bf16.msra.mxu0 0
    %778 = vmatprep.subr.bf16.mxu0 0
    %779 = vmatpush1.bf16.msra.mxu0 0
    %780 = vmatprep.subr.bf16.mxu0 0
    %781 = vmatpush1.bf16.msra.mxu0 0
    %782 = vmatprep.subr.bf16.mxu0 0
    %783 = vmatpush1.bf16.msra.mxu0 0
    %784 = vmatprep.subr.bf16.mxu0 0
    %785 = vmatpush1.bf16.msra.mxu0 0
    %786 = vmatprep.subr.bf16.mxu0 0
    %787 = vmatpush1.bf16.msra.mxu0 0
    %788 = vmatprep.mubr.bf16.mxu0 0
    %789 = vmatmul.mubr.bf16.gmra.mrb[0].mxu0 %v308
    %v790 = vpop.f32.mrb[0].mxu0
    %v791 = vadd.f32 0.0, %v790
    %v792 = vpop.f32.mrb[0].mxu0
    %v793 = vadd.f32 0.0, %v792
    %v794 = vpop.f32.mrb[0].mxu0
    %v795 = vadd.f32 0.0, %v794
    %v796 = vpop.f32.mrb[0].mxu0
    %v797 = vadd.f32 0.0, %v796
    %798 = vmatprep.mubr.bf16.mxu0 0
    %799 = vmatmul.mubr.bf16.gmra.mrb[0].mxu0 %v311
    %v800 = vpop.f32.mrb[0].mxu0
    %v801 = vadd.f32 0.0, %v800
    %v802 = vpop.f32.mrb[0].mxu0
    %v803 = vadd.f32 0.0, %v802
    %v804 = vpop.f32.mrb[0].mxu0
    %v805 = vadd.f32 0.0, %v804
    %v806 = vpop.f32.mrb[0].mxu0
    %v807 = vadd.f32 0.0, %v806
    %808 = vmatprep.mubr.bf16.mxu0 0
    %809 = vmatmul.mubr.bf16.gmra.mrb[0].mxu0 %v314
    %v810 = vpop.f32.mrb[0].mxu0
    %v811 = vadd.f32 0.0, %v810
    %v812 = vpop.f32.mrb[0].mxu0
    %v813 = vadd.f32 0.0, %v812
    %v814 = vpop.f32.mrb[0].mxu0
    %v815 = vadd.f32 0.0, %v814
    %v816 = vpop.f32.mrb[0].mxu0
    %v817 = vadd.f32 0.0, %v816
    %818 = vmatprep.mubr.bf16.mxu0 0
    %819 = vmatmul.mubr.bf16.gmra.mrb[0].mxu0 %v317
    %v820 = vpop.f32.mrb[0].mxu0
    %v821 = vadd.f32 0.0, %v820
    %v822 = vpop.f32.mrb[0].mxu0
    %v823 = vadd.f32 0.0, %v822
    %v824 = vpop.f32.mrb[0].mxu0
    %v825 = vadd.f32 0.0, %v824
    %v826 = vpop.f32.mrb[0].mxu0
    %v827 = vadd.f32 0.0, %v826
    %828 = vmatprep.mubr.bf16.mxu0 0
    %829 = vmatmul.mubr.bf16.gmra.mrb[0].mxu0 %v320
    %v830 = vpop.f32.mrb[0].mxu0
    %v831 = vadd.f32 0.0, %v830
    %v832 = vpop.f32.mrb[0].mxu0
    %v833 = vadd.f32 0.0, %v832
    %v834 = vpop.f32.mrb[0].mxu0
    %v835 = vadd.f32 0.0, %v834
    %v836 = vpop.f32.mrb[0].mxu0
    %v837 = vadd.f32 0.0, %v836
    %838 = vmatprep.mubr.bf16.mxu0 0
    %839 = vmatmul.mubr.bf16.gmra.mrb[0].mxu0 %v323
    %v840 = vpop.f32.mrb[0].mxu0
    %v841 = vadd.f32 0.0, %v840
    %v842 = vpop.f32.mrb[0].mxu0
    %v843 = vadd.f32 0.0, %v842
    %v844 = vpop.f32.mrb[0].mxu0
    %v845 = vadd.f32 0.0, %v844
    %v846 = vpop.f32.mrb[0].mxu0
    %v847 = vadd.f32 0.0, %v846
    %848 = vmatprep.mubr.bf16.mxu0 0
    %849 = vmatmul.mubr.bf16.gmra.mrb[0].mxu0 %v326
    %v850 = vpop.f32.mrb[0].mxu0
    %v851 = vadd.f32 0.0, %v850
    %v852 = vpop.f32.mrb[0].mxu0
    %v853 = vadd.f32 0.0, %v852
    %v854 = vpop.f32.mrb[0].mxu0
    %v855 = vadd.f32 0.0, %v854
    %v856 = vpop.f32.mrb[0].mxu0
    %v857 = vadd.f32 0.0, %v856
    %858 = vmatprep.mubr.bf16.mxu0 0
    %859 = vmatmul.mubr.bf16.gmra.mrb[0].mxu0 %v329
    %v860 = vpop.f32.mrb[0].mxu0
    %v861 = vadd.f32 0.0, %v860
    %v862 = vpop.f32.mrb[0].mxu0
    %v863 = vadd.f32 0.0, %v862
    %v864 = vpop.f32.mrb[0].mxu0
    %v865 = vadd.f32 0.0, %v864
    %v866 = vpop.f32.mrb[0].mxu0
    %v867 = vadd.f32 0.0, %v866
    %868 = vmatprep.mubr.bf16.mxu0 0
    %869 = vmatmul.mubr.bf16.gmra.mrb[0].mxu0 %v332
    %v870 = vpop.f32.mrb[0].mxu0
    %v871 = vadd.f32 0.0, %v870
    %v872 = vpop.f32.mrb[0].mxu0
    %v873 = vadd.f32 0.0, %v872
    %v874 = vpop.f32.mrb[0].mxu0
    %v875 = vadd.f32 0.0, %v874
    %v876 = vpop.f32.mrb[0].mxu0
    %v877 = vadd.f32 0.0, %v876
    %878 = vmatprep.mubr.bf16.mxu0 0
    %879 = vmatmul.mubr.bf16.gmra.mrb[0].mxu0 %v335
    %v880 = vpop.f32.mrb[0].mxu0
    %v881 = vadd.f32 0.0, %v880
    %v882 = vpop.f32.mrb[0].mxu0
    %v883 = vadd.f32 0.0, %v882
    %v884 = vpop.f32.mrb[0].mxu0
    %v885 = vadd.f32 0.0, %v884
    %v886 = vpop.f32.mrb[0].mxu0
    %v887 = vadd.f32 0.0, %v886
    %888 = vmatprep.mubr.bf16.mxu0 0
    %889 = vmatmul.mubr.bf16.gmra.mrb[0].mxu0 %v338
    %v890 = vpop.f32.mrb[0].mxu0
    %v891 = vadd.f32 0.0, %v890
    %v892 = vpop.f32.mrb[0].mxu0
    %v893 = vadd.f32 0.0, %v892
    %v894 = vpop.f32.mrb[0].mxu0
    %v895 = vadd.f32 0.0, %v894
    %v896 = vpop.f32.mrb[0].mxu0
    %v897 = vadd.f32 0.0, %v896
    %898 = vmatprep.mubr.bf16.mxu0 0
    %899 = vmatmul.mubr.bf16.gmra.mrb[0].mxu0 %v341
    %v900 = vpop.f32.mrb[0].mxu0
    %v901 = vadd.f32 0.0, %v900
    %v902 = vpop.f32.mrb[0].mxu0
    %v903 = vadd.f32 0.0, %v902
    %v904 = vpop.f32.mrb[0].mxu0
    %v905 = vadd.f32 0.0, %v904
    %v906 = vpop.f32.mrb[0].mxu0
    %v907 = vadd.f32 0.0, %v906
    %908 = vmatprep.mubr.bf16.mxu0 0
    %909 = vmatmul.mubr.bf16.gmra.mrb[0].mxu0 %v344
    %v910 = vpop.f32.mrb[0].mxu0
    %v911 = vadd.f32 0.0, %v910
    %v912 = vpop.f32.mrb[0].mxu0
    %v913 = vadd.f32 0.0, %v912
    %v914 = vpop.f32.mrb[0].mxu0
    %v915 = vadd.f32 0.0, %v914
    %v916 = vpop.f32.mrb[0].mxu0
    %v917 = vadd.f32 0.0, %v916
    %918 = vmatprep.mubr.bf16.mxu0 0
    %919 = vmatmul.mubr.bf16.gmra.mrb[0].mxu0 %v347
    %v920 = vpop.f32.mrb[0].mxu0
    %v921 = vadd.f32 0.0, %v920
    %v922 = vpop.f32.mrb[0].mxu0
    %v923 = vadd.f32 0.0, %v922
    %v924 = vpop.f32.mrb[0].mxu0
    %v925 = vadd.f32 0.0, %v924
    %v926 = vpop.f32.mrb[0].mxu0
    %v927 = vadd.f32 0.0, %v926
    %928 = vmatprep.mubr.bf16.mxu0 0
    %929 = vmatmul.mubr.bf16.gmra.mrb[0].mxu0 %v350
    %v930 = vpop.f32.mrb[0].mxu0
    %v931 = vadd.f32 0.0, %v930
    %v932 = vpop.f32.mrb[0].mxu0
    %v933 = vadd.f32 0.0, %v932
    %v934 = vpop.f32.mrb[0].mxu0
    %v935 = vadd.f32 0.0, %v934
    %v936 = vpop.f32.mrb[0].mxu0
    %v937 = vadd.f32 0.0, %v936
    %938 = vmatprep.mubr.bf16.mxu0 0
    %939 = vmatmul.mubr.bf16.gmra.mrb[0].mxu0 %v353
    %v940 = vpop.f32.mrb[0].mxu0
    %v941 = vadd.f32 0.0, %v940
    %v942 = vpop.f32.mrb[0].mxu0
    %v943 = vadd.f32 0.0, %v942
    %v944 = vpop.f32.mrb[0].mxu0
    %v945 = vadd.f32 0.0, %v944
    %v946 = vpop.f32.mrb[0].mxu0
    %v947 = vadd.f32 0.0, %v946
    %948 = vmatprep.mubr.bf16.mxu0 0
    %949 = vmatmul.mubr.bf16.gmra.mrb[0].mxu0 %v356
    %v950 = vpop.f32.mrb[0].mxu0
    %v951 = vadd.f32 0.0, %v950
    %v952 = vpop.f32.mrb[0].mxu0
    %v953 = vadd.f32 0.0, %v952
    %v954 = vpop.f32.mrb[0].mxu0
    %v955 = vadd.f32 0.0, %v954
    %v956 = vpop.f32.mrb[0].mxu0
    %v957 = vadd.f32 0.0, %v956
    %958 = vmatprep.mubr.bf16.mxu0 0
    %959 = vmatmul.mubr.bf16.gmra.mrb[0].mxu0 %v359
    %v960 = vpop.f32.mrb[0].mxu0
    %v961 = vadd.f32 0.0, %v960
    %v962 = vpop.f32.mrb[0].mxu0
    %v963 = vadd.f32 0.0, %v962
    %v964 = vpop.f32.mrb[0].mxu0
    %v965 = vadd.f32 0.0, %v964
    %v966 = vpop.f32.mrb[0].mxu0
    %v967 = vadd.f32 0.0, %v966
    %968 = vmatprep.mubr.bf16.mxu0 0
    %969 = vmatmul.mubr.bf16.gmra.mrb[0].mxu0 %v362
    %v970 = vpop.f32.mrb[0].mxu0
    %v971 = vadd.f32 0.0, %v970
    %v972 = vpop.f32.mrb[0].mxu0
    %v973 = vadd.f32 0.0, %v972
    %v974 = vpop.f32.mrb[0].mxu0
    %v975 = vadd.f32 0.0, %v974
    %v976 = vpop.f32.mrb[0].mxu0
    %v977 = vadd.f32 0.0, %v976
    %978 = vmatprep.mubr.bf16.mxu0 0
    %979 = vmatmul.mubr.bf16.gmra.mrb[0].mxu0 %v365
    %v980 = vpop.f32.mrb[0].mxu0
    %v981 = vadd.f32 0.0, %v980
    %v982 = vpop.f32.mrb[0].mxu0
    %v983 = vadd.f32 0.0, %v982
    %v984 = vpop.f32.mrb[0].mxu0
    %v985 = vadd.f32 0.0, %v984
    %v986 = vpop.f32.mrb[0].mxu0
    %v987 = vadd.f32 0.0, %v986
    %988 = vmatprep.mubr.bf16.mxu0 0
    %989 = vmatmul.mubr.bf16.gmra.mrb[0].mxu0 %v368
    %v990 = vpop.f32.mrb[0].mxu0
    %v991 = vadd.f32 0.0, %v990
    %v992 = vpop.f32.mrb[0].mxu0
    %v993 = vadd.f32 0.0, %v992
    %v994 = vpop.f32.mrb[0].mxu0
    %v995 = vadd.f32 0.0, %v994
    %v996 = vpop.f32.mrb[0].mxu0
    %v997 = vadd.f32 0.0, %v996
    %998 = vmatprep.mubr.bf16.mxu0 0
    %999 = vmatmul.mubr.bf16.gmra.mrb[0].mxu0 %v371
    %v1000 = vpop.f32.mrb[0].mxu0
    %v1001 = vadd.f32 0.0, %v1000
    %v1002 = vpop.f32.mrb[0].mxu0
    %v1003 = vadd.f32 0.0, %v1002
    %v1004 = vpop.f32.mrb[0].mxu0
    %v1005 = vadd.f32 0.0, %v1004
    %v1006 = vpop.f32.mrb[0].mxu0
    %v1007 = vadd.f32 0.0, %v1006
    %1008 = vmatprep.mubr.bf16.mxu0 0
    %1009 = vmatmul.mubr.bf16.gmra.mrb[0].mxu0 %v374
    %v1010 = vpop.f32.mrb[0].mxu0
    %v1011 = vadd.f32 0.0, %v1010
    %v1012 = vpop.f32.mrb[0].mxu0
    %v1013 = vadd.f32 0.0, %v1012
    %v1014 = vpop.f32.mrb[0].mxu0
    %v1015 = vadd.f32 0.0, %v1014
    %v1016 = vpop.f32.mrb[0].mxu0
    %v1017 = vadd.f32 0.0, %v1016
    %1018 = vmatprep.mubr.bf16.mxu0 0
    %1019 = vmatmul.mubr.bf16.gmra.mrb[0].mxu0 %v377
    %v1020 = vpop.f32.mrb[0].mxu0
    %v1021 = vadd.f32 0.0, %v1020
    %v1022 = vpop.f32.mrb[0].mxu0
    %v1023 = vadd.f32 0.0, %v1022
    %v1024 = vpop.f32.mrb[0].mxu0
    %v1025 = vadd.f32 0.0, %v1024
    %v1026 = vpop.f32.mrb[0].mxu0
    %v1027 = vadd.f32 0.0, %v1026
    %1028 = vmatprep.mubr.bf16.mxu0 0
    %1029 = vmatmul.mubr.bf16.gmra.mrb[0].mxu0 %v380
    %v1030 = vpop.f32.mrb[0].mxu0
    %v1031 = vadd.f32 0.0, %v1030
    %v1032 = vpop.f32.mrb[0].mxu0
    %v1033 = vadd.f32 0.0, %v1032
    %v1034 = vpop.f32.mrb[0].mxu0
    %v1035 = vadd.f32 0.0, %v1034
    %v1036 = vpop.f32.mrb[0].mxu0
    %v1037 = vadd.f32 0.0, %v1036
    %1038 = vmatprep.mubr.bf16.mxu0 0
    %1039 = vmatmul.mubr.bf16.gmra.mrb[0].mxu0 %v383
    %v1040 = vpop.f32.mrb[0].mxu0
    %v1041 = vadd.f32 0.0, %v1040
    %v1042 = vpop.f32.mrb[0].mxu0
    %v1043 = vadd.f32 0.0, %v1042
    %v1044 = vpop.f32.mrb[0].mxu0
    %v1045 = vadd.f32 0.0, %v1044
    %v1046 = vpop.f32.mrb[0].mxu0
    %v1047 = vadd.f32 0.0, %v1046
    %1048 = vmatprep.mubr.bf16.mxu0 0
    %1049 = vmatmul.mubr.bf16.gmra.mrb[0].mxu0 %v386
    %v1050 = vpop.f32.mrb[0].mxu0
    %v1051 = vadd.f32 0.0, %v1050
    %v1052 = vpop.f32.mrb[0].mxu0
    %v1053 = vadd.f32 0.0, %v1052
    %v1054 = vpop.f32.mrb[0].mxu0
    %v1055 = vadd.f32 0.0, %v1054
    %v1056 = vpop.f32.mrb[0].mxu0
    %v1057 = vadd.f32 0.0, %v1056
    %1058 = vmatprep.mubr.bf16.mxu0 0
    %1059 = vmatmul.mubr.bf16.gmra.mrb[0].mxu0 %v389
    %v1060 = vpop.f32.mrb[0].mxu0
    %v1061 = vadd.f32 0.0, %v1060
    %v1062 = vpop.f32.mrb[0].mxu0
    %v1063 = vadd.f32 0.0, %v1062
    %v1064 = vpop.f32.mrb[0].mxu0
    %v1065 = vadd.f32 0.0, %v1064
    %v1066 = vpop.f32.mrb[0].mxu0
    %v1067 = vadd.f32 0.0, %v1066
    %1068 = vmatprep.mubr.bf16.mxu0 0
    %1069 = vmatmul.mubr.bf16.gmra.mrb[0].mxu0 %v392
    %v1070 = vpop.f32.mrb[0].mxu0
    %v1071 = vadd.f32 0.0, %v1070
    %v1072 = vpop.f32.mrb[0].mxu0
    %v1073 = vadd.f32 0.0, %v1072
    %v1074 = vpop.f32.mrb[0].mxu0
    %v1075 = vadd.f32 0.0, %v1074
    %v1076 = vpop.f32.mrb[0].mxu0
    %v1077 = vadd.f32 0.0, %v1076
    %1078 = vmatprep.mubr.bf16.mxu0 0
    %1079 = vmatmul.mubr.bf16.gmra.mrb[0].mxu0 %v395
    %v1080 = vpop.f32.mrb[0].mxu0
    %v1081 = vadd.f32 0.0, %v1080
    %v1082 = vpop.f32.mrb[0].mxu0
    %v1083 = vadd.f32 0.0, %v1082
    %v1084 = vpop.f32.mrb[0].mxu0
    %v1085 = vadd.f32 0.0, %v1084
    %v1086 = vpop.f32.mrb[0].mxu0
    %v1087 = vadd.f32 0.0, %v1086
    %1088 = vmatprep.mubr.bf16.mxu0 0
    %1089 = vmatmul.mubr.bf16.gmra.mrb[0].mxu0 %v398
    %v1090 = vpop.f32.mrb[0].mxu0
    %v1091 = vadd.f32 0.0, %v1090
    %v1092 = vpop.f32.mrb[0].mxu0
    %v1093 = vadd.f32 0.0, %v1092
    %v1094 = vpop.f32.mrb[0].mxu0
    %v1095 = vadd.f32 0.0, %v1094
    %v1096 = vpop.f32.mrb[0].mxu0
    %v1097 = vadd.f32 0.0, %v1096
    %1098 = vmatprep.mubr.bf16.mxu0 0
    %1099 = vmatmul.mubr.bf16.gmra.mrb[0].mxu0 %v401
    %v1100 = vpop.f32.mrb[0].mxu0
    %v1101 = vadd.f32 0.0, %v1100
    %v1102 = vpop.f32.mrb[0].mxu0
    %v1103 = vadd.f32 0.0, %v1102
    %v1104 = vpop.f32.mrb[0].mxu0
    %v1105 = vadd.f32 0.0, %v1104
    %v1106 = vpop.f32.mrb[0].mxu0
    %v1107 = vadd.f32 0.0, %v1106
    %1108 = vdwg.mxu0
    %v1109 = vmax.f32 %v438, 0.0
    %v1110 = vmax.f32 %v440, 0.0
    %v1111 = vmax.f32 %v791, 0.0
    %v1112 = vmax.f32 %v793, 0.0
    %v1113 = vmax.f32 %v442, 0.0
    %v1114 = vmax.f32 %v444, 0.0
    %v1115 = vmax.f32 %v795, 0.0
    %v1116 = vmax.f32 %v797, 0.0
    %v1117 = vmax.f32 %v448, 0.0
    %v1118 = vmax.f32 %v450, 0.0
    %v1119 = vmax.f32 %v801, 0.0
    %v1120 = vmax.f32 %v803, 0.0
    %v1121 = vmax.f32 %v452, 0.0
    %v1122 = vmax.f32 %v454, 0.0
    %v1123 = vmax.f32 %v805, 0.0
    %v1124 = vmax.f32 %v807, 0.0
    %v1125 = vmax.f32 %v458, 0.0
    %v1126 = vmax.f32 %v460, 0.0
    %v1127 = vmax.f32 %v811, 0.0
    %v1128 = vmax.f32 %v813, 0.0
    %v1129 = vmax.f32 %v462, 0.0
    %v1130 = vmax.f32 %v464, 0.0
    %v1131 = vmax.f32 %v815, 0.0
    %v1132 = vmax.f32 %v817, 0.0
    %v1133 = vmax.f32 %v468, 0.0
    %v1134 = vmax.f32 %v470, 0.0
    %v1135 = vmax.f32 %v821, 0.0
    %v1136 = vmax.f32 %v823, 0.0
    %v1137 = vmax.f32 %v472, 0.0
    %v1138 = vmax.f32 %v474, 0.0
    %v1139 = vmax.f32 %v825, 0.0
    %v1140 = vmax.f32 %v827, 0.0
    %v1141 = vmax.f32 %v478, 0.0
    %v1142 = vmax.f32 %v480, 0.0
    %v1143 = vmax.f32 %v831, 0.0
    %v1144 = vmax.f32 %v833, 0.0
    %v1145 = vmax.f32 %v482, 0.0
    %v1146 = vmax.f32 %v484, 0.0
    %v1147 = vmax.f32 %v835, 0.0
    %v1148 = vmax.f32 %v837, 0.0
    %v1149 = vmax.f32 %v488, 0.0
    %v1150 = vmax.f32 %v490, 0.0
    %v1151 = vmax.f32 %v841, 0.0
    %v1152 = vmax.f32 %v843, 0.0
    %v1153 = vmax.f32 %v492, 0.0
    %v1154 = vmax.f32 %v494, 0.0
    %v1155 = vmax.f32 %v845, 0.0
    %v1156 = vmax.f32 %v847, 0.0
    %v1157 = vmax.f32 %v498, 0.0
    %v1158 = vmax.f32 %v500, 0.0
    %v1159 = vmax.f32 %v851, 0.0
    %v1160 = vmax.f32 %v853, 0.0
    %v1161 = vmax.f32 %v502, 0.0
    %v1162 = vmax.f32 %v504, 0.0
    %v1163 = vmax.f32 %v855, 0.0
    %v1164 = vmax.f32 %v857, 0.0
    %v1165 = vmax.f32 %v508, 0.0
    %v1166 = vmax.f32 %v510, 0.0
    %v1167 = vmax.f32 %v861, 0.0
    %v1168 = vmax.f32 %v863, 0.0
    %v1169 = vmax.f32 %v512, 0.0
    %v1170 = vmax.f32 %v514, 0.0
    %v1171 = vmax.f32 %v865, 0.0
    %v1172 = vmax.f32 %v867, 0.0
    %v1173 = vmax.f32 %v518, 0.0
    %v1174 = vmax.f32 %v520, 0.0
    %v1175 = vmax.f32 %v871, 0.0
    %v1176 = vmax.f32 %v873, 0.0
    %v1177 = vmax.f32 %v522, 0.0
    %v1178 = vmax.f32 %v524, 0.0
    %v1179 = vmax.f32 %v875, 0.0
    %v1180 = vmax.f32 %v877, 0.0
    %v1181 = vmax.f32 %v528, 0.0
    %v1182 = vmax.f32 %v530, 0.0
    %v1183 = vmax.f32 %v881, 0.0
    %v1184 = vmax.f32 %v883, 0.0
    %v1185 = vmax.f32 %v532, 0.0
    %v1186 = vmax.f32 %v534, 0.0
    %v1187 = vmax.f32 %v885, 0.0
    %v1188 = vmax.f32 %v887, 0.0
    %v1189 = vmax.f32 %v538, 0.0
    %v1190 = vmax.f32 %v540, 0.0
    %v1191 = vmax.f32 %v891, 0.0
    %v1192 = vmax.f32 %v893, 0.0
    %v1193 = vmax.f32 %v542, 0.0
    %v1194 = vmax.f32 %v544, 0.0
    %v1195 = vmax.f32 %v895, 0.0
    %v1196 = vmax.f32 %v897, 0.0
    %v1197 = vmax.f32 %v548, 0.0
    %v1198 = vmax.f32 %v550, 0.0
    %v1199 = vmax.f32 %v901, 0.0
    %v1200 = vmax.f32 %v903, 0.0
    %v1201 = vmax.f32 %v552, 0.0
    %v1202 = vmax.f32 %v554, 0.0
    %v1203 = vmax.f32 %v905, 0.0
    %v1204 = vmax.f32 %v907, 0.0
    %v1205 = vmax.f32 %v558, 0.0
    %v1206 = vmax.f32 %v560, 0.0
    %v1207 = vmax.f32 %v911, 0.0
    %v1208 = vmax.f32 %v913, 0.0
    %v1209 = vmax.f32 %v562, 0.0
    %v1210 = vmax.f32 %v564, 0.0
    %v1211 = vmax.f32 %v915, 0.0
    %v1212 = vmax.f32 %v917, 0.0
    %v1213 = vmax.f32 %v568, 0.0
    %v1214 = vmax.f32 %v570, 0.0
    %v1215 = vmax.f32 %v921, 0.0
    %v1216 = vmax.f32 %v923, 0.0
    %v1217 = vmax.f32 %v572, 0.0
    %v1218 = vmax.f32 %v574, 0.0
    %v1219 = vmax.f32 %v925, 0.0
    %v1220 = vmax.f32 %v927, 0.0
    %v1221 = vmax.f32 %v578, 0.0
    %v1222 = vmax.f32 %v580, 0.0
    %v1223 = vmax.f32 %v931, 0.0
    %v1224 = vmax.f32 %v933, 0.0
    %v1225 = vmax.f32 %v582, 0.0
    %v1226 = vmax.f32 %v584, 0.0
    %v1227 = vmax.f32 %v935, 0.0
    %v1228 = vmax.f32 %v937, 0.0
    %v1229 = vmax.f32 %v588, 0.0
    %v1230 = vmax.f32 %v590, 0.0
    %v1231 = vmax.f32 %v941, 0.0
    %v1232 = vmax.f32 %v943, 0.0
    %v1233 = vmax.f32 %v592, 0.0
    %v1234 = vmax.f32 %v594, 0.0
    %v1235 = vmax.f32 %v945, 0.0
    %v1236 = vmax.f32 %v947, 0.0
    %v1237 = vmax.f32 %v598, 0.0
    %v1238 = vmax.f32 %v600, 0.0
    %v1239 = vmax.f32 %v951, 0.0
    %v1240 = vmax.f32 %v953, 0.0
    %v1241 = vmax.f32 %v602, 0.0
    %v1242 = vmax.f32 %v604, 0.0
    %v1243 = vmax.f32 %v955, 0.0
    %v1244 = vmax.f32 %v957, 0.0
    %v1245 = vmax.f32 %v608, 0.0
    %v1246 = vmax.f32 %v610, 0.0
    %v1247 = vmax.f32 %v961, 0.0
    %v1248 = vmax.f32 %v963, 0.0
    %v1249 = vmax.f32 %v612, 0.0
    %v1250 = vmax.f32 %v614, 0.0
    %v1251 = vmax.f32 %v965, 0.0
    %v1252 = vmax.f32 %v967, 0.0
    %v1253 = vmax.f32 %v618, 0.0
    %v1254 = vmax.f32 %v620, 0.0
    %v1255 = vmax.f32 %v971, 0.0
    %v1256 = vmax.f32 %v973, 0.0
    %v1257 = vmax.f32 %v622, 0.0
    %v1258 = vmax.f32 %v624, 0.0
    %v1259 = vmax.f32 %v975, 0.0
    %v1260 = vmax.f32 %v977, 0.0
    %v1261 = vmax.f32 %v628, 0.0
    %v1262 = vmax.f32 %v630, 0.0
    %v1263 = vmax.f32 %v981, 0.0
    %v1264 = vmax.f32 %v983, 0.0
    %v1265 = vmax.f32 %v632, 0.0
    %v1266 = vmax.f32 %v634, 0.0
    %v1267 = vmax.f32 %v985, 0.0
    %v1268 = vmax.f32 %v987, 0.0
    %v1269 = vmax.f32 %v638, 0.0
    %v1270 = vmax.f32 %v640, 0.0
    %v1271 = vmax.f32 %v991, 0.0
    %v1272 = vmax.f32 %v993, 0.0
    %v1273 = vmax.f32 %v642, 0.0
    %v1274 = vmax.f32 %v644, 0.0
    %v1275 = vmax.f32 %v995, 0.0
    %v1276 = vmax.f32 %v997, 0.0
    %v1277 = vmax.f32 %v648, 0.0
    %v1278 = vmax.f32 %v650, 0.0
    %v1279 = vmax.f32 %v1001, 0.0
    %v1280 = vmax.f32 %v1003, 0.0
    %v1281 = vmax.f32 %v652, 0.0
    %v1282 = vmax.f32 %v654, 0.0
    %v1283 = vmax.f32 %v1005, 0.0
    %v1284 = vmax.f32 %v1007, 0.0
    %v1285 = vmax.f32 %v658, 0.0
    %v1286 = vmax.f32 %v660, 0.0
    %v1287 = vmax.f32 %v1011, 0.0
    %v1288 = vmax.f32 %v1013, 0.0
    %v1289 = vmax.f32 %v662, 0.0
    %v1290 = vmax.f32 %v664, 0.0
    %v1291 = vmax.f32 %v1015, 0.0
    %v1292 = vmax.f32 %v1017, 0.0
    %v1293 = vmax.f32 %v668, 0.0
    %v1294 = vmax.f32 %v670, 0.0
    %v1295 = vmax.f32 %v1021, 0.0
    %v1296 = vmax.f32 %v1023, 0.0
    %v1297 = vmax.f32 %v672, 0.0
    %v1298 = vmax.f32 %v674, 0.0
    %v1299 = vmax.f32 %v1025, 0.0
    %v1300 = vmax.f32 %v1027, 0.0
    %v1301 = vmax.f32 %v678, 0.0
    %v1302 = vmax.f32 %v680, 0.0
    %v1303 = vmax.f32 %v1031, 0.0
    %v1304 = vmax.f32 %v1033, 0.0
    %v1305 = vmax.f32 %v682, 0.0
    %v1306 = vmax.f32 %v684, 0.0
    %v1307 = vmax.f32 %v1035, 0.0
    %v1308 = vmax.f32 %v1037, 0.0
    %v1309 = vmax.f32 %v688, 0.0
    %v1310 = vmax.f32 %v690, 0.0
    %v1311 = vmax.f32 %v1041, 0.0
    %v1312 = vmax.f32 %v1043, 0.0
    %v1313 = vmax.f32 %v692, 0.0
    %v1314 = vmax.f32 %v694, 0.0
    %v1315 = vmax.f32 %v1045, 0.0
    %v1316 = vmax.f32 %v1047, 0.0
    %v1317 = vmax.f32 %v698, 0.0
    %v1318 = vmax.f32 %v700, 0.0
    %v1319 = vmax.f32 %v1051, 0.0
    %v1320 = vmax.f32 %v1053, 0.0
    %v1321 = vmax.f32 %v702, 0.0
    %v1322 = vmax.f32 %v704, 0.0
    %v1323 = vmax.f32 %v1055, 0.0
    %v1324 = vmax.f32 %v1057, 0.0
    %v1325 = vmax.f32 %v708, 0.0
    %v1326 = vmax.f32 %v710, 0.0
    %v1327 = vmax.f32 %v1061, 0.0
    %v1328 = vmax.f32 %v1063, 0.0
    %v1329 = vmax.f32 %v712, 0.0
    %v1330 = vmax.f32 %v714, 0.0
    %v1331 = vmax.f32 %v1065, 0.0
    %v1332 = vmax.f32 %v1067, 0.0
    %v1333 = vmax.f32 %v718, 0.0
    %v1334 = vmax.f32 %v720, 0.0
    %v1335 = vmax.f32 %v1071, 0.0
    %v1336 = vmax.f32 %v1073, 0.0
    %v1337 = vmax.f32 %v722, 0.0
    %v1338 = vmax.f32 %v724, 0.0
    %v1339 = vmax.f32 %v1075, 0.0
    %v1340 = vmax.f32 %v1077, 0.0
    %v1341 = vmax.f32 %v728, 0.0
    %v1342 = vmax.f32 %v730, 0.0
    %v1343 = vmax.f32 %v1081, 0.0
    %v1344 = vmax.f32 %v1083, 0.0
    %v1345 = vmax.f32 %v732, 0.0
    %v1346 = vmax.f32 %v734, 0.0
    %v1347 = vmax.f32 %v1085, 0.0
    %v1348 = vmax.f32 %v1087, 0.0
    %v1349 = vmax.f32 %v738, 0.0
    %v1350 = vmax.f32 %v740, 0.0
    %v1351 = vmax.f32 %v1091, 0.0
    %v1352 = vmax.f32 %v1093, 0.0
    %v1353 = vmax.f32 %v742, 0.0
    %v1354 = vmax.f32 %v744, 0.0
    %v1355 = vmax.f32 %v1095, 0.0
    %v1356 = vmax.f32 %v1097, 0.0
    %v1357 = vmax.f32 %v748, 0.0
    %v1358 = vmax.f32 %v750, 0.0
    %v1359 = vmax.f32 %v1101, 0.0
    %v1360 = vmax.f32 %v1103, 0.0
    %v1361 = vmax.f32 %v752, 0.0
    %v1362 = vmax.f32 %v754, 0.0
    %v1363 = vmax.f32 %v1105, 0.0
    %v1364 = vmax.f32 %v1107, 0.0
    %v1365 = vld [vmem:[%s2] sm:$0xff]
    %v1367 = vcombine.high %v1365, %v1365
    %v1369 = vunpack.c.l.s4 1983009808
    %v1370 = vunpack.c.0.s8 %v1369
    %v1371 = vlaneseq
    %v1372 = vshrl.u32 %v1371, 7
    %v1373 = vsub.s32 %v1370, %v1372
    %v1374 = vrot.slane %v1365, %v1373
    %v1376 = vunpack.c.l.s4 1983009808
    %v1377 = vunpack.c.0.s8 %v1376
    %v1378 = vlaneseq
    %v1379 = vshrl.u32 %v1378, 7
    %v1380 = vsub.s32 %v1377, %v1379
    %v1381 = vrot.slane %v1367, %v1380
    %v1382 = vcombine.high %v1374, %v1374
    %v1383 = vcombine.high %v1381, %v1381
    %1388 = vmatprep.subr.mxu0 %v1110
    %1389 = vmatpush1.msra.mxu0 %v1109
    %1390 = vmatprep.subr.mxu0 %v1114
    %1391 = vmatpush1.msra.mxu0 %v1113
    %1392 = vmatprep.subr.mxu0 %v1118
    %1393 = vmatpush1.msra.mxu0 %v1117
    %1394 = vmatprep.subr.mxu0 %v1122
    %1395 = vmatpush1.msra.mxu0 %v1121
    %1396 = vmatprep.subr.mxu0 %v1126
    %1397 = vmatpush1.msra.mxu0 %v1125
    %1398 = vmatprep.subr.mxu0 %v1130
    %1399 = vmatpush1.msra.mxu0 %v1129
    %1400 = vmatprep.subr.mxu0 %v1134
    %1401 = vmatpush1.msra.mxu0 %v1133
    %1402 = vmatprep.subr.mxu0 %v1138
    %1403 = vmatpush1.msra.mxu0 %v1137
    %1404 = vmatprep.subr.mxu0 %v1142
    %1405 = vmatpush1.msra.mxu0 %v1141
    %1406 = vmatprep.subr.mxu0 %v1146
    %1407 = vmatpush1.msra.mxu0 %v1145
    %1408 = vmatprep.subr.mxu0 %v1150
    %1409 = vmatpush1.msra.mxu0 %v1149
    %1410 = vmatprep.subr.mxu0 %v1154
    %1411 = vmatpush1.msra.mxu0 %v1153
    %1412 = vmatprep.subr.mxu0 %v1158
    %1413 = vmatpush1.msra.mxu0 %v1157
    %1414 = vmatprep.subr.mxu0 %v1162
    %1415 = vmatpush1.msra.mxu0 %v1161
    %1416 = vmatprep.subr.mxu0 %v1166
    %1417 = vmatpush1.msra.mxu0 %v1165
    %1418 = vmatprep.subr.mxu0 %v1170
    %1419 = vmatpush1.msra.mxu0 %v1169
    %1420 = vmatprep.subr.mxu0 %v1174
    %1421 = vmatpush1.msra.mxu0 %v1173
    %1422 = vmatprep.subr.mxu0 %v1178
    %1423 = vmatpush1.msra.mxu0 %v1177
    %1424 = vmatprep.subr.mxu0 %v1182
    %1425 = vmatpush1.msra.mxu0 %v1181
    %1426 = vmatprep.subr.mxu0 %v1186
    %1427 = vmatpush1.msra.mxu0 %v1185
    %1428 = vmatprep.subr.mxu0 %v1190
    %1429 = vmatpush1.msra.mxu0 %v1189
    %1430 = vmatprep.subr.mxu0 %v1194
    %1431 = vmatpush1.msra.mxu0 %v1193
    %1432 = vmatprep.subr.mxu0 %v1198
    %1433 = vmatpush1.msra.mxu0 %v1197
    %1434 = vmatprep.subr.mxu0 %v1202
    %1435 = vmatpush1.msra.mxu0 %v1201
    %1436 = vmatprep.subr.mxu0 %v1206
    %1437 = vmatpush1.msra.mxu0 %v1205
    %1438 = vmatprep.subr.mxu0 %v1210
    %1439 = vmatpush1.msra.mxu0 %v1209
    %1440 = vmatprep.subr.mxu0 %v1214
    %1441 = vmatpush1.msra.mxu0 %v1213
    %1442 = vmatprep.subr.mxu0 %v1218
    %1443 = vmatpush1.msra.mxu0 %v1217
    %1444 = vmatprep.subr.mxu0 %v1222
    %1445 = vmatpush1.msra.mxu0 %v1221
    %1446 = vmatprep.subr.mxu0 %v1226
    %1447 = vmatpush1.msra.mxu0 %v1225
    %1448 = vmatprep.subr.mxu0 %v1230
    %1449 = vmatpush1.msra.mxu0 %v1229
    %1450 = vmatprep.subr.mxu0 %v1234
    %1451 = vmatpush1.msra.mxu0 %v1233
    %1452 = vmatprep.mubr.f32.mxu0 %v1382
    %1453 = vmatmul.mubr.f32.gmra.mrb[0].mxu0 %v1374
    %v1454 = vpop.f32.mrb[0].mxu0
    %v1455 = vadd.f32 0.0, %v1454
    %v1456 = vpop.f32.mrb[0].mxu0
    %v1457 = vadd.f32 0.0, %v1456
    %1458 = vdwg.mxu0
    %1459 = vmatprep.subr.mxu0 %v1238
    %1460 = vmatpush1.msra.mxu0 %v1237
    %1461 = vmatprep.subr.mxu0 %v1242
    %1462 = vmatpush1.msra.mxu0 %v1241
    %1463 = vmatprep.subr.mxu0 %v1246
    %1464 = vmatpush1.msra.mxu0 %v1245
    %1465 = vmatprep.subr.mxu0 %v1250
    %1466 = vmatpush1.msra.mxu0 %v1249
    %1467 = vmatprep.subr.mxu0 %v1254
    %1468 = vmatpush1.msra.mxu0 %v1253
    %1469 = vmatprep.subr.mxu0 %v1258
    %1470 = vmatpush1.msra.mxu0 %v1257
    %1471 = vmatprep.subr.mxu0 %v1262
    %1472 = vmatpush1.msra.mxu0 %v1261
    %1473 = vmatprep.subr.mxu0 %v1266
    %1474 = vmatpush1.msra.mxu0 %v1265
    %1475 = vmatprep.subr.mxu0 %v1270
    %1476 = vmatpush1.msra.mxu0 %v1269
    %1477 = vmatprep.subr.mxu0 %v1274
    %1478 = vmatpush1.msra.mxu0 %v1273
    %1479 = vmatprep.subr.mxu0 %v1278
    %1480 = vmatpush1.msra.mxu0 %v1277
    %1481 = vmatprep.subr.mxu0 %v1282
    %1482 = vmatpush1.msra.mxu0 %v1281
    %1483 = vmatprep.subr.mxu0 %v1286
    %1484 = vmatpush1.msra.mxu0 %v1285
    %1485 = vmatprep.subr.mxu0 %v1290
    %1486 = vmatpush1.msra.mxu0 %v1289
    %1487 = vmatprep.subr.mxu0 %v1294
    %1488 = vmatpush1.msra.mxu0 %v1293
    %1489 = vmatprep.subr.mxu0 %v1298
    %1490 = vmatpush1.msra.mxu0 %v1297
    %1491 = vmatprep.subr.mxu0 %v1302
    %1492 = vmatpush1.msra.mxu0 %v1301
    %1493 = vmatprep.subr.mxu0 %v1306
    %1494 = vmatpush1.msra.mxu0 %v1305
    %1495 = vmatprep.subr.mxu0 %v1310
    %1496 = vmatpush1.msra.mxu0 %v1309
    %1497 = vmatprep.subr.mxu0 %v1314
    %1498 = vmatpush1.msra.mxu0 %v1313
    %1499 = vmatprep.subr.mxu0 %v1318
    %1500 = vmatpush1.msra.mxu0 %v1317
    %1501 = vmatprep.subr.mxu0 %v1322
    %1502 = vmatpush1.msra.mxu0 %v1321
    %1503 = vmatprep.subr.mxu0 %v1326
    %1504 = vmatpush1.msra.mxu0 %v1325
    %1505 = vmatprep.subr.mxu0 %v1330
    %1506 = vmatpush1.msra.mxu0 %v1329
    %1507 = vmatprep.subr.mxu0 %v1334
    %1508 = vmatpush1.msra.mxu0 %v1333
    %1509 = vmatprep.subr.mxu0 %v1338
    %1510 = vmatpush1.msra.mxu0 %v1337
    %1511 = vmatprep.subr.mxu0 %v1342
    %1512 = vmatpush1.msra.mxu0 %v1341
    %1513 = vmatprep.subr.mxu0 %v1346
    %1514 = vmatpush1.msra.mxu0 %v1345
    %1515 = vmatprep.subr.mxu0 %v1350
    %1516 = vmatpush1.msra.mxu0 %v1349
    %1517 = vmatprep.subr.mxu0 %v1354
    %1518 = vmatpush1.msra.mxu0 %v1353
    %1519 = vmatprep.subr.mxu0 %v1358
    %1520 = vmatpush1.msra.mxu0 %v1357
    %1521 = vmatprep.subr.mxu0 %v1362
    %1522 = vmatpush1.msra.mxu0 %v1361
    %1523 = vmatprep.mubr.f32.mxu0 %v1383
    %1524 = vmatmul.mubr.f32.gmra.mrb[0].mxu0 %v1381
    %v1525 = vpop.f32.mrb[0].mxu0
    %v1526 = vadd.f32 %v1455, %v1525
    %v1527 = vpop.f32.mrb[0].mxu0
    %v1528 = vadd.f32 %v1457, %v1527
    %1529 = vdwg.mxu0
    %1530 = vmatprep.subr.mxu0 %v1112
    %1531 = vmatpush1.msra.mxu0 %v1111
    %1532 = vmatprep.subr.mxu0 %v1116
    %1533 = vmatpush1.msra.mxu0 %v1115
    %1534 = vmatprep.subr.mxu0 %v1120
    %1535 = vmatpush1.msra.mxu0 %v1119
    %1536 = vmatprep.subr.mxu0 %v1124
    %1537 = vmatpush1.msra.mxu0 %v1123
    %1538 = vmatprep.subr.mxu0 %v1128
    %1539 = vmatpush1.msra.mxu0 %v1127
    %1540 = vmatprep.subr.mxu0 %v1132
    %1541 = vmatpush1.msra.mxu0 %v1131
    %1542 = vmatprep.subr.mxu0 %v1136
    %1543 = vmatpush1.msra.mxu0 %v1135
    %1544 = vmatprep.subr.mxu0 %v1140
    %1545 = vmatpush1.msra.mxu0 %v1139
    %1546 = vmatprep.subr.mxu0 %v1144
    %1547 = vmatpush1.msra.mxu0 %v1143
    %1548 = vmatprep.subr.mxu0 %v1148
    %1549 = vmatpush1.msra.mxu0 %v1147
    %1550 = vmatprep.subr.mxu0 %v1152
    %1551 = vmatpush1.msra.mxu0 %v1151
    %1552 = vmatprep.subr.mxu0 %v1156
    %1553 = vmatpush1.msra.mxu0 %v1155
    %1554 = vmatprep.subr.mxu0 %v1160
    %1555 = vmatpush1.msra.mxu0 %v1159
    %1556 = vmatprep.subr.mxu0 %v1164
    %1557 = vmatpush1.msra.mxu0 %v1163
    %1558 = vmatprep.subr.mxu0 %v1168
    %1559 = vmatpush1.msra.mxu0 %v1167
    %1560 = vmatprep.subr.mxu0 %v1172
    %1561 = vmatpush1.msra.mxu0 %v1171
    %1562 = vmatprep.subr.mxu0 %v1176
    %1563 = vmatpush1.msra.mxu0 %v1175
    %1564 = vmatprep.subr.mxu0 %v1180
    %1565 = vmatpush1.msra.mxu0 %v1179
    %1566 = vmatprep.subr.mxu0 %v1184
    %1567 = vmatpush1.msra.mxu0 %v1183
    %1568 = vmatprep.subr.mxu0 %v1188
    %1569 = vmatpush1.msra.mxu0 %v1187
    %1570 = vmatprep.subr.mxu0 %v1192
    %1571 = vmatpush1.msra.mxu0 %v1191
    %1572 = vmatprep.subr.mxu0 %v1196
    %1573 = vmatpush1.msra.mxu0 %v1195
    %1574 = vmatprep.subr.mxu0 %v1200
    %1575 = vmatpush1.msra.mxu0 %v1199
    %1576 = vmatprep.subr.mxu0 %v1204
    %1577 = vmatpush1.msra.mxu0 %v1203
    %1578 = vmatprep.subr.mxu0 %v1208
    %1579 = vmatpush1.msra.mxu0 %v1207
    %1580 = vmatprep.subr.mxu0 %v1212
    %1581 = vmatpush1.msra.mxu0 %v1211
    %1582 = vmatprep.subr.mxu0 %v1216
    %1583 = vmatpush1.msra.mxu0 %v1215
    %1584 = vmatprep.subr.mxu0 %v1220
    %1585 = vmatpush1.msra.mxu0 %v1219
    %1586 = vmatprep.subr.mxu0 %v1224
    %1587 = vmatpush1.msra.mxu0 %v1223
    %1588 = vmatprep.subr.mxu0 %v1228
    %1589 = vmatpush1.msra.mxu0 %v1227
    %1590 = vmatprep.subr.mxu0 %v1232
    %1591 = vmatpush1.msra.mxu0 %v1231
    %1592 = vmatprep.subr.mxu0 %v1236
    %1593 = vmatpush1.msra.mxu0 %v1235
    %1594 = vmatprep.mubr.f32.mxu0 %v1382
    %1595 = vmatmul.mubr.f32.gmra.mrb[0].mxu0 %v1374
    %v1596 = vpop.f32.mrb[0].mxu0
    %v1597 = vadd.f32 0.0, %v1596
    %v1598 = vpop.f32.mrb[0].mxu0
    %v1599 = vadd.f32 0.0, %v1598
    %1600 = vdwg.mxu0
    %1601 = vmatprep.subr.mxu0 %v1240
    %1602 = vmatpush1.msra.mxu0 %v1239
    %1603 = vmatprep.subr.mxu0 %v1244
    %1604 = vmatpush1.msra.mxu0 %v1243
    %1605 = vmatprep.subr.mxu0 %v1248
    %1606 = vmatpush1.msra.mxu0 %v1247
    %1607 = vmatprep.subr.mxu0 %v1252
    %1608 = vmatpush1.msra.mxu0 %v1251
    %1609 = vmatprep.subr.mxu0 %v1256
    %1610 = vmatpush1.msra.mxu0 %v1255
    %1611 = vmatprep.subr.mxu0 %v1260
    %1612 = vmatpush1.msra.mxu0 %v1259
    %1613 = vmatprep.subr.mxu0 %v1264
    %1614 = vmatpush1.msra.mxu0 %v1263
    %1615 = vmatprep.subr.mxu0 %v1268
    %1616 = vmatpush1.msra.mxu0 %v1267
    %1617 = vmatprep.subr.mxu0 %v1272
    %1618 = vmatpush1.msra.mxu0 %v1271
    %1619 = vmatprep.subr.mxu0 %v1276
    %1620 = vmatpush1.msra.mxu0 %v1275
    %1621 = vmatprep.subr.mxu0 %v1280
    %1622 = vmatpush1.msra.mxu0 %v1279
    %1623 = vmatprep.subr.mxu0 %v1284
    %1624 = vmatpush1.msra.mxu0 %v1283
    %1625 = vmatprep.subr.mxu0 %v1288
    %1626 = vmatpush1.msra.mxu0 %v1287
    %1627 = vmatprep.subr.mxu0 %v1292
    %1628 = vmatpush1.msra.mxu0 %v1291
    %1629 = vmatprep.subr.mxu0 %v1296
    %1630 = vmatpush1.msra.mxu0 %v1295
    %1631 = vmatprep.subr.mxu0 %v1300
    %1632 = vmatpush1.msra.mxu0 %v1299
    %1633 = vmatprep.subr.mxu0 %v1304
    %1634 = vmatpush1.msra.mxu0 %v1303
    %1635 = vmatprep.subr.mxu0 %v1308
    %1636 = vmatpush1.msra.mxu0 %v1307
    %1637 = vmatprep.subr.mxu0 %v1312
    %1638 = vmatpush1.msra.mxu0 %v1311
    %1639 = vmatprep.subr.mxu0 %v1316
    %1640 = vmatpush1.msra.mxu0 %v1315
    %1641 = vmatprep.subr.mxu0 %v1320
    %1642 = vmatpush1.msra.mxu0 %v1319
    %1643 = vmatprep.subr.mxu0 %v1324
    %1644 = vmatpush1.msra.mxu0 %v1323
    %1645 = vmatprep.subr.mxu0 %v1328
    %1646 = vmatpush1.msra.mxu0 %v1327
    %1647 = vmatprep.subr.mxu0 %v1332
    %1648 = vmatpush1.msra.mxu0 %v1331
    %1649 = vmatprep.subr.mxu0 %v1336
    %1650 = vmatpush1.msra.mxu0 %v1335
    %1651 = vmatprep.subr.mxu0 %v1340
    %1652 = vmatpush1.msra.mxu0 %v1339
    %1653 = vmatprep.subr.mxu0 %v1344
    %1654 = vmatpush1.msra.mxu0 %v1343
    %1655 = vmatprep.subr.mxu0 %v1348
    %1656 = vmatpush1.msra.mxu0 %v1347
    %1657 = vmatprep.subr.mxu0 %v1352
    %1658 = vmatpush1.msra.mxu0 %v1351
    %1659 = vmatprep.subr.mxu0 %v1356
    %1660 = vmatpush1.msra.mxu0 %v1355
    %1661 = vmatprep.subr.mxu0 %v1360
    %1662 = vmatpush1.msra.mxu0 %v1359
    %1663 = vmatprep.subr.mxu0 %v1364
    %1664 = vmatpush1.msra.mxu0 %v1363
    %1665 = vmatprep.mubr.f32.mxu0 %v1383
    %1666 = vmatmul.mubr.f32.gmra.mrb[0].mxu0 %v1381
    %v1667 = vpop.f32.mrb[0].mxu0
    %v1668 = vadd.f32 %v1597, %v1667
    %v1669 = vpop.f32.mrb[0].mxu0
    %v1670 = vadd.f32 %v1599, %v1669
    %1671 = vdwg.mxu0
    %v1672 = vpack.c.bf16 %v1526, %v1526
    %v1673 = vpack.c.bf16 %v1528, %v1528
    %v1674 = vpack.c.bf16 %v1668, %v1668
    %v1675 = vpack.c.bf16 %v1670, %v1670
    %v1676 = vld [vmem:[%s3] sm:$0xff]
    %v1677 = vld [vmem:[%s3 + $0x8] sm:$0xff]
    %v1678 = vld [vmem:[%s3 + $0x10] sm:$0xff]
    %v1679 = vld [vmem:[%s3 + $0x18] sm:$0xff]
    %v1680 = vld [vmem:[%s3 + $0x20] sm:$0xff]
    %v1681 = vld [vmem:[%s3 + $0x28] sm:$0xff]
    %v1682 = vld [vmem:[%s3 + $0x30] sm:$0xff]
    %v1683 = vld [vmem:[%s3 + $0x38] sm:$0xff]
    %v1684 = vld [vmem:[%s3 + $0x40] sm:$0xff]
    %v1685 = vld [vmem:[%s3 + $0x48] sm:$0xff]
    %v1686 = vld [vmem:[%s3 + $0x50] sm:$0xff]
    %v1687 = vld [vmem:[%s3 + $0x58] sm:$0xff]
    %v1688 = vld [vmem:[%s3 + $0x60] sm:$0xff]
    %v1689 = vld [vmem:[%s3 + $0x68] sm:$0xff]
    %v1690 = vld [vmem:[%s3 + $0x70] sm:$0xff]
    %v1691 = vld [vmem:[%s3 + $0x78] sm:$0xff]
    %v1692 = vld [vmem:[%s3 + $0x80] sm:$0xff]
    %v1693 = vld [vmem:[%s3 + $0x88] sm:$0xff]
    %v1694 = vld [vmem:[%s3 + $0x90] sm:$0xff]
    %v1695 = vld [vmem:[%s3 + $0x98] sm:$0xff]
    %v1696 = vld [vmem:[%s3 + $0xa0] sm:$0xff]
    %v1697 = vld [vmem:[%s3 + $0xa8] sm:$0xff]
    %v1698 = vld [vmem:[%s3 + $0xb0] sm:$0xff]
    %v1699 = vld [vmem:[%s3 + $0xb8] sm:$0xff]
    %v1700 = vld [vmem:[%s3 + $0xc0] sm:$0xff]
    %v1701 = vld [vmem:[%s3 + $0xc8] sm:$0xff]
    %v1702 = vld [vmem:[%s3 + $0xd0] sm:$0xff]
    %v1703 = vld [vmem:[%s3 + $0xd8] sm:$0xff]
    %v1704 = vld [vmem:[%s3 + $0xe0] sm:$0xff]
    %v1705 = vld [vmem:[%s3 + $0xe8] sm:$0xff]
    %v1706 = vld [vmem:[%s3 + $0xf0] sm:$0xff]
    %v1707 = vld [vmem:[%s3 + $0xf8] sm:$0xff]
    %v1708 = vld [vmem:[%s3 + $0x100] sm:$0xff]
    %v1709 = vld [vmem:[%s3 + $0x108] sm:$0xff]
    %v1710 = vld [vmem:[%s3 + $0x110] sm:$0xff]
    %v1711 = vld [vmem:[%s3 + $0x118] sm:$0xff]
    %v1712 = vld [vmem:[%s3 + $0x120] sm:$0xff]
    %v1713 = vld [vmem:[%s3 + $0x128] sm:$0xff]
    %v1714 = vld [vmem:[%s3 + $0x130] sm:$0xff]
    %v1715 = vld [vmem:[%s3 + $0x138] sm:$0xff]
    %v1716 = vld [vmem:[%s3 + $0x140] sm:$0xff]
    %v1717 = vld [vmem:[%s3 + $0x148] sm:$0xff]
    %v1718 = vld [vmem:[%s3 + $0x150] sm:$0xff]
    %v1719 = vld [vmem:[%s3 + $0x158] sm:$0xff]
    %v1720 = vld [vmem:[%s3 + $0x160] sm:$0xff]
    %v1721 = vld [vmem:[%s3 + $0x168] sm:$0xff]
    %v1722 = vld [vmem:[%s3 + $0x170] sm:$0xff]
    %v1723 = vld [vmem:[%s3 + $0x178] sm:$0xff]
    %v1724 = vld [vmem:[%s3 + $0x180] sm:$0xff]
    %v1725 = vld [vmem:[%s3 + $0x188] sm:$0xff]
    %v1726 = vld [vmem:[%s3 + $0x190] sm:$0xff]
    %v1727 = vld [vmem:[%s3 + $0x198] sm:$0xff]
    %v1728 = vld [vmem:[%s3 + $0x1a0] sm:$0xff]
    %v1729 = vld [vmem:[%s3 + $0x1a8] sm:$0xff]
    %v1730 = vld [vmem:[%s3 + $0x1b0] sm:$0xff]
    %v1731 = vld [vmem:[%s3 + $0x1b8] sm:$0xff]
    %v1732 = vld [vmem:[%s3 + $0x1c0] sm:$0xff]
    %v1733 = vld [vmem:[%s3 + $0x1c8] sm:$0xff]
    %v1734 = vld [vmem:[%s3 + $0x1d0] sm:$0xff]
    %v1735 = vld [vmem:[%s3 + $0x1d8] sm:$0xff]
    %v1736 = vld [vmem:[%s3 + $0x1e0] sm:$0xff]
    %v1737 = vld [vmem:[%s3 + $0x1e8] sm:$0xff]
    %v1738 = vld [vmem:[%s3 + $0x1f0] sm:$0xff]
    %v1739 = vld [vmem:[%s3 + $0x1f8] sm:$0xff]
    %v1740 = vld [vmem:[%s3 + $0x200] sm:$0xff]
    %v1741 = vld [vmem:[%s3 + $0x208] sm:$0xff]
    %v1742 = vld [vmem:[%s3 + $0x210] sm:$0xff]
    %v1743 = vld [vmem:[%s3 + $0x218] sm:$0xff]
    %v1744 = vld [vmem:[%s3 + $0x220] sm:$0xff]
    %v1745 = vld [vmem:[%s3 + $0x228] sm:$0xff]
    %v1746 = vld [vmem:[%s3 + $0x230] sm:$0xff]
    %v1747 = vld [vmem:[%s3 + $0x238] sm:$0xff]
    %v1748 = vld [vmem:[%s3 + $0x240] sm:$0xff]
    %v1749 = vld [vmem:[%s3 + $0x248] sm:$0xff]
    %v1750 = vld [vmem:[%s3 + $0x250] sm:$0xff]
    %v1751 = vld [vmem:[%s3 + $0x258] sm:$0xff]
    %v1752 = vld [vmem:[%s3 + $0x260] sm:$0xff]
    %v1753 = vld [vmem:[%s3 + $0x268] sm:$0xff]
    %v1754 = vld [vmem:[%s3 + $0x270] sm:$0xff]
    %v1755 = vld [vmem:[%s3 + $0x278] sm:$0xff]
    %v1756 = vld [vmem:[%s3 + $0x280] sm:$0xff]
    %v1757 = vld [vmem:[%s3 + $0x288] sm:$0xff]
    %v1758 = vld [vmem:[%s3 + $0x290] sm:$0xff]
    %v1759 = vld [vmem:[%s3 + $0x298] sm:$0xff]
    %v1760 = vld [vmem:[%s3 + $0x2a0] sm:$0xff]
    %v1761 = vld [vmem:[%s3 + $0x2a8] sm:$0xff]
    %v1762 = vld [vmem:[%s3 + $0x2b0] sm:$0xff]
    %v1763 = vld [vmem:[%s3 + $0x2b8] sm:$0xff]
    %v1764 = vld [vmem:[%s3 + $0x2c0] sm:$0xff]
    %v1765 = vld [vmem:[%s3 + $0x2c8] sm:$0xff]
    %v1766 = vld [vmem:[%s3 + $0x2d0] sm:$0xff]
    %v1767 = vld [vmem:[%s3 + $0x2d8] sm:$0xff]
    %v1768 = vld [vmem:[%s3 + $0x2e0] sm:$0xff]
    %v1769 = vld [vmem:[%s3 + $0x2e8] sm:$0xff]
    %v1770 = vld [vmem:[%s3 + $0x2f0] sm:$0xff]
    %v1771 = vld [vmem:[%s3 + $0x2f8] sm:$0xff]
    %v1772 = vld [vmem:[%s3 + $0x300] sm:$0xff]
    %v1773 = vld [vmem:[%s3 + $0x308] sm:$0xff]
    %v1774 = vld [vmem:[%s3 + $0x310] sm:$0xff]
    %v1775 = vld [vmem:[%s3 + $0x318] sm:$0xff]
    %v1776 = vld [vmem:[%s3 + $0x320] sm:$0xff]
    %v1777 = vld [vmem:[%s3 + $0x328] sm:$0xff]
    %v1778 = vld [vmem:[%s3 + $0x330] sm:$0xff]
    %v1779 = vld [vmem:[%s3 + $0x338] sm:$0xff]
    %v1780 = vld [vmem:[%s3 + $0x340] sm:$0xff]
    %v1781 = vld [vmem:[%s3 + $0x348] sm:$0xff]
    %v1782 = vld [vmem:[%s3 + $0x350] sm:$0xff]
    %v1783 = vld [vmem:[%s3 + $0x358] sm:$0xff]
    %v1784 = vld [vmem:[%s3 + $0x360] sm:$0xff]
    %v1785 = vld [vmem:[%s3 + $0x368] sm:$0xff]
    %v1786 = vld [vmem:[%s3 + $0x370] sm:$0xff]
    %v1787 = vld [vmem:[%s3 + $0x378] sm:$0xff]
    %v1788 = vld [vmem:[%s3 + $0x380] sm:$0xff]
    %v1789 = vld [vmem:[%s3 + $0x388] sm:$0xff]
    %v1790 = vld [vmem:[%s3 + $0x390] sm:$0xff]
    %v1791 = vld [vmem:[%s3 + $0x398] sm:$0xff]
    %v1792 = vld [vmem:[%s3 + $0x3a0] sm:$0xff]
    %v1793 = vld [vmem:[%s3 + $0x3a8] sm:$0xff]
    %v1794 = vld [vmem:[%s3 + $0x3b0] sm:$0xff]
    %v1795 = vld [vmem:[%s3 + $0x3b8] sm:$0xff]
    %v1796 = vld [vmem:[%s3 + $0x3c0] sm:$0xff]
    %v1797 = vld [vmem:[%s3 + $0x3c8] sm:$0xff]
    %v1798 = vld [vmem:[%s3 + $0x3d0] sm:$0xff]
    %v1799 = vld [vmem:[%s3 + $0x3d8] sm:$0xff]
    %v1800 = vld [vmem:[%s3 + $0x3e0] sm:$0xff]
    %v1801 = vld [vmem:[%s3 + $0x3e8] sm:$0xff]
    %v1802 = vld [vmem:[%s3 + $0x3f0] sm:$0xff]
    %v1803 = vld [vmem:[%s3 + $0x3f8] sm:$0xff]
    %v1932 = vunpack.c.l.b16 %v1676
    %v1933 = vunpack.c.h.b16 %v1676
    %v1934 = vunpack.c.l.b16 %v1677
    %v1935 = vunpack.c.h.b16 %v1677
    %v1936 = vunpack.c.l.b16 %v1678
    %v1937 = vunpack.c.h.b16 %v1678
    %v1938 = vunpack.c.l.b16 %v1679
    %v1939 = vunpack.c.h.b16 %v1679
    %v1940 = vunpack.c.l.b16 %v1680
    %v1941 = vunpack.c.h.b16 %v1680
    %v1942 = vunpack.c.l.b16 %v1681
    %v1943 = vunpack.c.h.b16 %v1681
    %v1944 = vunpack.c.l.b16 %v1682
    %v1945 = vunpack.c.h.b16 %v1682
    %v1946 = vunpack.c.l.b16 %v1683
    %v1947 = vunpack.c.h.b16 %v1683
    %v1948 = vunpack.c.l.b16 %v1684
    %v1949 = vunpack.c.h.b16 %v1684
    %v1950 = vunpack.c.l.b16 %v1685
    %v1951 = vunpack.c.h.b16 %v1685
    %v1952 = vunpack.c.l.b16 %v1686
    %v1953 = vunpack.c.h.b16 %v1686
    %v1954 = vunpack.c.l.b16 %v1687
    %v1955 = vunpack.c.h.b16 %v1687
    %v1956 = vunpack.c.l.b16 %v1688
    %v1957 = vunpack.c.h.b16 %v1688
    %v1958 = vunpack.c.l.b16 %v1689
    %v1959 = vunpack.c.h.b16 %v1689
    %v1960 = vunpack.c.l.b16 %v1690
    %v1961 = vunpack.c.h.b16 %v1690
    %v1962 = vunpack.c.l.b16 %v1691
    %v1963 = vunpack.c.h.b16 %v1691
    %v1964 = vunpack.c.l.b16 %v1692
    %v1965 = vunpack.c.h.b16 %v1692
    %v1966 = vunpack.c.l.b16 %v1693
    %v1967 = vunpack.c.h.b16 %v1693
    %v1968 = vunpack.c.l.b16 %v1694
    %v1969 = vunpack.c.h.b16 %v1694
    %v1970 = vunpack.c.l.b16 %v1695
    %v1971 = vunpack.c.h.b16 %v1695
    %v1972 = vunpack.c.l.b16 %v1696
    %v1973 = vunpack.c.h.b16 %v1696
    %v1974 = vunpack.c.l.b16 %v1697
    %v1975 = vunpack.c.h.b16 %v1697
    %v1976 = vunpack.c.l.b16 %v1698
    %v1977 = vunpack.c.h.b16 %v1698
    %v1978 = vunpack.c.l.b16 %v1699
    %v1979 = vunpack.c.h.b16 %v1699
    %v1980 = vunpack.c.l.b16 %v1700
    %v1981 = vunpack.c.h.b16 %v1700
    %v1982 = vunpack.c.l.b16 %v1701
    %v1983 = vunpack.c.h.b16 %v1701
    %v1984 = vunpack.c.l.b16 %v1702
    %v1985 = vunpack.c.h.b16 %v1702
    %v1986 = vunpack.c.l.b16 %v1703
    %v1987 = vunpack.c.h.b16 %v1703
    %v1988 = vunpack.c.l.b16 %v1704
    %v1989 = vunpack.c.h.b16 %v1704
    %v1990 = vunpack.c.l.b16 %v1705
    %v1991 = vunpack.c.h.b16 %v1705
    %v1992 = vunpack.c.l.b16 %v1706
    %v1993 = vunpack.c.h.b16 %v1706
    %v1994 = vunpack.c.l.b16 %v1707
    %v1995 = vunpack.c.h.b16 %v1707
    %v1996 = vunpack.c.l.b16 %v1708
    %v1997 = vunpack.c.h.b16 %v1708
    %v1998 = vunpack.c.l.b16 %v1709
    %v1999 = vunpack.c.h.b16 %v1709
    %v2000 = vunpack.c.l.b16 %v1710
    %v2001 = vunpack.c.h.b16 %v1710
    %v2002 = vunpack.c.l.b16 %v1711
    %v2003 = vunpack.c.h.b16 %v1711
    %v2004 = vunpack.c.l.b16 %v1712
    %v2005 = vunpack.c.h.b16 %v1712
    %v2006 = vunpack.c.l.b16 %v1713
    %v2007 = vunpack.c.h.b16 %v1713
    %v2008 = vunpack.c.l.b16 %v1714
    %v2009 = vunpack.c.h.b16 %v1714
    %v2010 = vunpack.c.l.b16 %v1715
    %v2011 = vunpack.c.h.b16 %v1715
    %v2012 = vunpack.c.l.b16 %v1716
    %v2013 = vunpack.c.h.b16 %v1716
    %v2014 = vunpack.c.l.b16 %v1717
    %v2015 = vunpack.c.h.b16 %v1717
    %v2016 = vunpack.c.l.b16 %v1718
    %v2017 = vunpack.c.h.b16 %v1718
    %v2018 = vunpack.c.l.b16 %v1719
    %v2019 = vunpack.c.h.b16 %v1719
    %v2020 = vunpack.c.l.b16 %v1720
    %v2021 = vunpack.c.h.b16 %v1720
    %v2022 = vunpack.c.l.b16 %v1721
    %v2023 = vunpack.c.h.b16 %v1721
    %v2024 = vunpack.c.l.b16 %v1722
    %v2025 = vunpack.c.h.b16 %v1722
    %v2026 = vunpack.c.l.b16 %v1723
    %v2027 = vunpack.c.h.b16 %v1723
    %v2028 = vunpack.c.l.b16 %v1724
    %v2029 = vunpack.c.h.b16 %v1724
    %v2030 = vunpack.c.l.b16 %v1725
    %v2031 = vunpack.c.h.b16 %v1725
    %v2032 = vunpack.c.l.b16 %v1726
    %v2033 = vunpack.c.h.b16 %v1726
    %v2034 = vunpack.c.l.b16 %v1727
    %v2035 = vunpack.c.h.b16 %v1727
    %v2036 = vunpack.c.l.b16 %v1728
    %v2037 = vunpack.c.h.b16 %v1728
    %v2038 = vunpack.c.l.b16 %v1729
    %v2039 = vunpack.c.h.b16 %v1729
    %v2040 = vunpack.c.l.b16 %v1730
    %v2041 = vunpack.c.h.b16 %v1730
    %v2042 = vunpack.c.l.b16 %v1731
    %v2043 = vunpack.c.h.b16 %v1731
    %v2044 = vunpack.c.l.b16 %v1732
    %v2045 = vunpack.c.h.b16 %v1732
    %v2046 = vunpack.c.l.b16 %v1733
    %v2047 = vunpack.c.h.b16 %v1733
    %v2048 = vunpack.c.l.b16 %v1734
    %v2049 = vunpack.c.h.b16 %v1734
    %v2050 = vunpack.c.l.b16 %v1735
    %v2051 = vunpack.c.h.b16 %v1735
    %v2052 = vunpack.c.l.b16 %v1736
    %v2053 = vunpack.c.h.b16 %v1736
    %v2054 = vunpack.c.l.b16 %v1737
    %v2055 = vunpack.c.h.b16 %v1737
    %v2056 = vunpack.c.l.b16 %v1738
    %v2057 = vunpack.c.h.b16 %v1738
    %v2058 = vunpack.c.l.b16 %v1739
    %v2059 = vunpack.c.h.b16 %v1739
    %v2060 = vunpack.c.l.b16 %v1740
    %v2061 = vunpack.c.h.b16 %v1740
    %v2062 = vunpack.c.l.b16 %v1741
    %v2063 = vunpack.c.h.b16 %v1741
    %v2064 = vunpack.c.l.b16 %v1742
    %v2065 = vunpack.c.h.b16 %v1742
    %v2066 = vunpack.c.l.b16 %v1743
    %v2067 = vunpack.c.h.b16 %v1743
    %v2068 = vunpack.c.l.b16 %v1744
    %v2069 = vunpack.c.h.b16 %v1744
    %v2070 = vunpack.c.l.b16 %v1745
    %v2071 = vunpack.c.h.b16 %v1745
    %v2072 = vunpack.c.l.b16 %v1746
    %v2073 = vunpack.c.h.b16 %v1746
    %v2074 = vunpack.c.l.b16 %v1747
    %v2075 = vunpack.c.h.b16 %v1747
    %v2076 = vunpack.c.l.b16 %v1748
    %v2077 = vunpack.c.h.b16 %v1748
    %v2078 = vunpack.c.l.b16 %v1749
    %v2079 = vunpack.c.h.b16 %v1749
    %v2080 = vunpack.c.l.b16 %v1750
    %v2081 = vunpack.c.h.b16 %v1750
    %v2082 = vunpack.c.l.b16 %v1751
    %v2083 = vunpack.c.h.b16 %v1751
    %v2084 = vunpack.c.l.b16 %v1752
    %v2085 = vunpack.c.h.b16 %v1752
    %v2086 = vunpack.c.l.b16 %v1753
    %v2087 = vunpack.c.h.b16 %v1753
    %v2088 = vunpack.c.l.b16 %v1754
    %v2089 = vunpack.c.h.b16 %v1754
    %v2090 = vunpack.c.l.b16 %v1755
    %v2091 = vunpack.c.h.b16 %v1755
    %v2092 = vunpack.c.l.b16 %v1756
    %v2093 = vunpack.c.h.b16 %v1756
    %v2094 = vunpack.c.l.b16 %v1757
    %v2095 = vunpack.c.h.b16 %v1757
    %v2096 = vunpack.c.l.b16 %v1758
    %v2097 = vunpack.c.h.b16 %v1758
    %v2098 = vunpack.c.l.b16 %v1759
    %v2099 = vunpack.c.h.b16 %v1759
    %v2100 = vunpack.c.l.b16 %v1760
    %v2101 = vunpack.c.h.b16 %v1760
    %v2102 = vunpack.c.l.b16 %v1761
    %v2103 = vunpack.c.h.b16 %v1761
    %v2104 = vunpack.c.l.b16 %v1762
    %v2105 = vunpack.c.h.b16 %v1762
    %v2106 = vunpack.c.l.b16 %v1763
    %v2107 = vunpack.c.h.b16 %v1763
    %v2108 = vunpack.c.l.b16 %v1764
    %v2109 = vunpack.c.h.b16 %v1764
    %v2110 = vunpack.c.l.b16 %v1765
    %v2111 = vunpack.c.h.b16 %v1765
    %v2112 = vunpack.c.l.b16 %v1766
    %v2113 = vunpack.c.h.b16 %v1766
    %v2114 = vunpack.c.l.b16 %v1767
    %v2115 = vunpack.c.h.b16 %v1767
    %v2116 = vunpack.c.l.b16 %v1768
    %v2117 = vunpack.c.h.b16 %v1768
    %v2118 = vunpack.c.l.b16 %v1769
    %v2119 = vunpack.c.h.b16 %v1769
    %v2120 = vunpack.c.l.b16 %v1770
    %v2121 = vunpack.c.h.b16 %v1770
    %v2122 = vunpack.c.l.b16 %v1771
    %v2123 = vunpack.c.h.b16 %v1771
    %v2124 = vunpack.c.l.b16 %v1772
    %v2125 = vunpack.c.h.b16 %v1772
    %v2126 = vunpack.c.l.b16 %v1773
    %v2127 = vunpack.c.h.b16 %v1773
    %v2128 = vunpack.c.l.b16 %v1774
    %v2129 = vunpack.c.h.b16 %v1774
    %v2130 = vunpack.c.l.b16 %v1775
    %v2131 = vunpack.c.h.b16 %v1775
    %v2132 = vunpack.c.l.b16 %v1776
    %v2133 = vunpack.c.h.b16 %v1776
    %v2134 = vunpack.c.l.b16 %v1777
    %v2135 = vunpack.c.h.b16 %v1777
    %v2136 = vunpack.c.l.b16 %v1778
    %v2137 = vunpack.c.h.b16 %v1778
    %v2138 = vunpack.c.l.b16 %v1779
    %v2139 = vunpack.c.h.b16 %v1779
    %v2140 = vunpack.c.l.b16 %v1780
    %v2141 = vunpack.c.h.b16 %v1780
    %v2142 = vunpack.c.l.b16 %v1781
    %v2143 = vunpack.c.h.b16 %v1781
    %v2144 = vunpack.c.l.b16 %v1782
    %v2145 = vunpack.c.h.b16 %v1782
    %v2146 = vunpack.c.l.b16 %v1783
    %v2147 = vunpack.c.h.b16 %v1783
    %v2148 = vunpack.c.l.b16 %v1784
    %v2149 = vunpack.c.h.b16 %v1784
    %v2150 = vunpack.c.l.b16 %v1785
    %v2151 = vunpack.c.h.b16 %v1785
    %v2152 = vunpack.c.l.b16 %v1786
    %v2153 = vunpack.c.h.b16 %v1786
    %v2154 = vunpack.c.l.b16 %v1787
    %v2155 = vunpack.c.h.b16 %v1787
    %v2156 = vunpack.c.l.b16 %v1788
    %v2157 = vunpack.c.h.b16 %v1788
    %v2158 = vunpack.c.l.b16 %v1789
    %v2159 = vunpack.c.h.b16 %v1789
    %v2160 = vunpack.c.l.b16 %v1790
    %v2161 = vunpack.c.h.b16 %v1790
    %v2162 = vunpack.c.l.b16 %v1791
    %v2163 = vunpack.c.h.b16 %v1791
    %v2164 = vunpack.c.l.b16 %v1792
    %v2165 = vunpack.c.h.b16 %v1792
    %v2166 = vunpack.c.l.b16 %v1793
    %v2167 = vunpack.c.h.b16 %v1793
    %v2168 = vunpack.c.l.b16 %v1794
    %v2169 = vunpack.c.h.b16 %v1794
    %v2170 = vunpack.c.l.b16 %v1795
    %v2171 = vunpack.c.h.b16 %v1795
    %v2172 = vunpack.c.l.b16 %v1796
    %v2173 = vunpack.c.h.b16 %v1796
    %v2174 = vunpack.c.l.b16 %v1797
    %v2175 = vunpack.c.h.b16 %v1797
    %v2176 = vunpack.c.l.b16 %v1798
    %v2177 = vunpack.c.h.b16 %v1798
    %v2178 = vunpack.c.l.b16 %v1799
    %v2179 = vunpack.c.h.b16 %v1799
    %v2180 = vunpack.c.l.b16 %v1800
    %v2181 = vunpack.c.h.b16 %v1800
    %v2182 = vunpack.c.l.b16 %v1801
    %v2183 = vunpack.c.h.b16 %v1801
    %v2184 = vunpack.c.l.b16 %v1802
    %v2185 = vunpack.c.h.b16 %v1802
    %v2186 = vunpack.c.l.b16 %v1803
    %v2187 = vunpack.c.h.b16 %v1803
    %v2188 = vpack.c.b16 %v1936, %v1932
    %v2189 = vpack.c.b16 %v1937, %v1933
    %v2190 = vpack.c.b16 %v1938, %v1934
    %v2191 = vpack.c.b16 %v1939, %v1935
    %v2192 = vpack.c.b16 %v1944, %v1940
    %v2193 = vpack.c.b16 %v1945, %v1941
    %v2194 = vpack.c.b16 %v1946, %v1942
    %v2195 = vpack.c.b16 %v1947, %v1943
    %v2196 = vpack.c.b16 %v1952, %v1948
    %v2197 = vpack.c.b16 %v1953, %v1949
    %v2198 = vpack.c.b16 %v1954, %v1950
    %v2199 = vpack.c.b16 %v1955, %v1951
    %v2200 = vpack.c.b16 %v1960, %v1956
    %v2201 = vpack.c.b16 %v1961, %v1957
    %v2202 = vpack.c.b16 %v1962, %v1958
    %v2203 = vpack.c.b16 %v1963, %v1959
    %v2204 = vpack.c.b16 %v1968, %v1964
    %v2205 = vpack.c.b16 %v1969, %v1965
    %v2206 = vpack.c.b16 %v1970, %v1966
    %v2207 = vpack.c.b16 %v1971, %v1967
    %v2208 = vpack.c.b16 %v1976, %v1972
    %v2209 = vpack.c.b16 %v1977, %v1973
    %v2210 = vpack.c.b16 %v1978, %v1974
    %v2211 = vpack.c.b16 %v1979, %v1975
    %v2212 = vpack.c.b16 %v1984, %v1980
    %v2213 = vpack.c.b16 %v1985, %v1981
    %v2214 = vpack.c.b16 %v1986, %v1982
    %v2215 = vpack.c.b16 %v1987, %v1983
    %v2216 = vpack.c.b16 %v1992, %v1988
    %v2217 = vpack.c.b16 %v1993, %v1989
    %v2218 = vpack.c.b16 %v1994, %v1990
    %v2219 = vpack.c.b16 %v1995, %v1991
    %v2220 = vpack.c.b16 %v2000, %v1996
    %v2221 = vpack.c.b16 %v2001, %v1997
    %v2222 = vpack.c.b16 %v2002, %v1998
    %v2223 = vpack.c.b16 %v2003, %v1999
    %v2224 = vpack.c.b16 %v2008, %v2004
    %v2225 = vpack.c.b16 %v2009, %v2005
    %v2226 = vpack.c.b16 %v2010, %v2006
    %v2227 = vpack.c.b16 %v2011, %v2007
    %v2228 = vpack.c.b16 %v2016, %v2012
    %v2229 = vpack.c.b16 %v2017, %v2013
    %v2230 = vpack.c.b16 %v2018, %v2014
    %v2231 = vpack.c.b16 %v2019, %v2015
    %v2232 = vpack.c.b16 %v2024, %v2020
    %v2233 = vpack.c.b16 %v2025, %v2021
    %v2234 = vpack.c.b16 %v2026, %v2022
    %v2235 = vpack.c.b16 %v2027, %v2023
    %v2236 = vpack.c.b16 %v2032, %v2028
    %v2237 = vpack.c.b16 %v2033, %v2029
    %v2238 = vpack.c.b16 %v2034, %v2030
    %v2239 = vpack.c.b16 %v2035, %v2031
    %v2240 = vpack.c.b16 %v2040, %v2036
    %v2241 = vpack.c.b16 %v2041, %v2037
    %v2242 = vpack.c.b16 %v2042, %v2038
    %v2243 = vpack.c.b16 %v2043, %v2039
    %v2244 = vpack.c.b16 %v2048, %v2044
    %v2245 = vpack.c.b16 %v2049, %v2045
    %v2246 = vpack.c.b16 %v2050, %v2046
    %v2247 = vpack.c.b16 %v2051, %v2047
    %v2248 = vpack.c.b16 %v2056, %v2052
    %v2249 = vpack.c.b16 %v2057, %v2053
    %v2250 = vpack.c.b16 %v2058, %v2054
    %v2251 = vpack.c.b16 %v2059, %v2055
    %v2252 = vpack.c.b16 %v2064, %v2060
    %v2253 = vpack.c.b16 %v2065, %v2061
    %v2254 = vpack.c.b16 %v2066, %v2062
    %v2255 = vpack.c.b16 %v2067, %v2063
    %v2256 = vpack.c.b16 %v2072, %v2068
    %v2257 = vpack.c.b16 %v2073, %v2069
    %v2258 = vpack.c.b16 %v2074, %v2070
    %v2259 = vpack.c.b16 %v2075, %v2071
    %v2260 = vpack.c.b16 %v2080, %v2076
    %v2261 = vpack.c.b16 %v2081, %v2077
    %v2262 = vpack.c.b16 %v2082, %v2078
    %v2263 = vpack.c.b16 %v2083, %v2079
    %v2264 = vpack.c.b16 %v2088, %v2084
    %v2265 = vpack.c.b16 %v2089, %v2085
    %v2266 = vpack.c.b16 %v2090, %v2086
    %v2267 = vpack.c.b16 %v2091, %v2087
    %v2268 = vpack.c.b16 %v2096, %v2092
    %v2269 = vpack.c.b16 %v2097, %v2093
    %v2270 = vpack.c.b16 %v2098, %v2094
    %v2271 = vpack.c.b16 %v2099, %v2095
    %v2272 = vpack.c.b16 %v2104, %v2100
    %v2273 = vpack.c.b16 %v2105, %v2101
    %v2274 = vpack.c.b16 %v2106, %v2102
    %v2275 = vpack.c.b16 %v2107, %v2103
    %v2276 = vpack.c.b16 %v2112, %v2108
    %v2277 = vpack.c.b16 %v2113, %v2109
    %v2278 = vpack.c.b16 %v2114, %v2110
    %v2279 = vpack.c.b16 %v2115, %v2111
    %v2280 = vpack.c.b16 %v2120, %v2116
    %v2281 = vpack.c.b16 %v2121, %v2117
    %v2282 = vpack.c.b16 %v2122, %v2118
    %v2283 = vpack.c.b16 %v2123, %v2119
    %v2284 = vpack.c.b16 %v2128, %v2124
    %v2285 = vpack.c.b16 %v2129, %v2125
    %v2286 = vpack.c.b16 %v2130, %v2126
    %v2287 = vpack.c.b16 %v2131, %v2127
    %v2288 = vpack.c.b16 %v2136, %v2132
    %v2289 = vpack.c.b16 %v2137, %v2133
    %v2290 = vpack.c.b16 %v2138, %v2134
    %v2291 = vpack.c.b16 %v2139, %v2135
    %v2292 = vpack.c.b16 %v2144, %v2140
    %v2293 = vpack.c.b16 %v2145, %v2141
    %v2294 = vpack.c.b16 %v2146, %v2142
    %v2295 = vpack.c.b16 %v2147, %v2143
    %v2296 = vpack.c.b16 %v2152, %v2148
    %v2297 = vpack.c.b16 %v2153, %v2149
    %v2298 = vpack.c.b16 %v2154, %v2150
    %v2299 = vpack.c.b16 %v2155, %v2151
    %v2300 = vpack.c.b16 %v2160, %v2156
    %v2301 = vpack.c.b16 %v2161, %v2157
    %v2302 = vpack.c.b16 %v2162, %v2158
    %v2303 = vpack.c.b16 %v2163, %v2159
    %v2304 = vpack.c.b16 %v2168, %v2164
    %v2305 = vpack.c.b16 %v2169, %v2165
    %v2306 = vpack.c.b16 %v2170, %v2166
    %v2307 = vpack.c.b16 %v2171, %v2167
    %v2308 = vpack.c.b16 %v2176, %v2172
    %v2309 = vpack.c.b16 %v2177, %v2173
    %v2310 = vpack.c.b16 %v2178, %v2174
    %v2311 = vpack.c.b16 %v2179, %v2175
    %v2312 = vpack.c.b16 %v2184, %v2180
    %v2313 = vpack.c.b16 %v2185, %v2181
    %v2314 = vpack.c.b16 %v2186, %v2182
    %v2315 = vpack.c.b16 %v2187, %v2183
    %2444 = vmatprep.subr.bf16.mxu0 %v2189
    %2445 = vmatpush1.bf16.msra.mxu0 %v2188
    %2446 = vmatprep.subr.bf16.mxu0 %v2193
    %2447 = vmatpush1.bf16.msra.mxu0 %v2192
    %2448 = vmatprep.subr.bf16.mxu0 %v2197
    %2449 = vmatpush1.bf16.msra.mxu0 %v2196
    %2450 = vmatprep.subr.bf16.mxu0 %v2201
    %2451 = vmatpush1.bf16.msra.mxu0 %v2200
    %2452 = vmatprep.subr.bf16.mxu0 %v2205
    %2453 = vmatpush1.bf16.msra.mxu0 %v2204
    %2454 = vmatprep.subr.bf16.mxu0 %v2209
    %2455 = vmatpush1.bf16.msra.mxu0 %v2208
    %2456 = vmatprep.subr.bf16.mxu0 %v2213
    %2457 = vmatpush1.bf16.msra.mxu0 %v2212
    %2458 = vmatprep.subr.bf16.mxu0 %v2217
    %2459 = vmatpush1.bf16.msra.mxu0 %v2216
    %2460 = vmatprep.subr.bf16.mxu0 %v2221
    %2461 = vmatpush1.bf16.msra.mxu0 %v2220
    %2462 = vmatprep.subr.bf16.mxu0 %v2225
    %2463 = vmatpush1.bf16.msra.mxu0 %v2224
    %2464 = vmatprep.subr.bf16.mxu0 %v2229
    %2465 = vmatpush1.bf16.msra.mxu0 %v2228
    %2466 = vmatprep.subr.bf16.mxu0 %v2233
    %2467 = vmatpush1.bf16.msra.mxu0 %v2232
    %2468 = vmatprep.subr.bf16.mxu0 %v2237
    %2469 = vmatpush1.bf16.msra.mxu0 %v2236
    %2470 = vmatprep.subr.bf16.mxu0 %v2241
    %2471 = vmatpush1.bf16.msra.mxu0 %v2240
    %2472 = vmatprep.subr.bf16.mxu0 %v2245
    %2473 = vmatpush1.bf16.msra.mxu0 %v2244
    %2474 = vmatprep.subr.bf16.mxu0 %v2249
    %2475 = vmatpush1.bf16.msra.mxu0 %v2248
    %2476 = vmatprep.mubr.bf16.mxu0 %v1673
    %2477 = vmatmul.mubr.bf16.gmra.mrb[0].mxu0 %v1672
    %v2478 = vpop.f32.mrb[0].mxu0
    %v2479 = vadd.f32 0.0, %v2478
    %v2480 = vpop.f32.mrb[0].mxu0
    %v2481 = vadd.f32 0.0, %v2480
    %v2482 = vpop.f32.mrb[0].mxu0
    %v2483 = vpop.f32.mrb[0].mxu0
    %2484 = vdwg.mxu0
    %2485 = vmatprep.subr.bf16.mxu0 %v2253
    %2486 = vmatpush1.bf16.msra.mxu0 %v2252
    %2487 = vmatprep.subr.bf16.mxu0 %v2257
    %2488 = vmatpush1.bf16.msra.mxu0 %v2256
    %2489 = vmatprep.subr.bf16.mxu0 %v2261
    %2490 = vmatpush1.bf16.msra.mxu0 %v2260
    %2491 = vmatprep.subr.bf16.mxu0 %v2265
    %2492 = vmatpush1.bf16.msra.mxu0 %v2264
    %2493 = vmatprep.subr.bf16.mxu0 %v2269
    %2494 = vmatpush1.bf16.msra.mxu0 %v2268
    %2495 = vmatprep.subr.bf16.mxu0 %v2273
    %2496 = vmatpush1.bf16.msra.mxu0 %v2272
    %2497 = vmatprep.subr.bf16.mxu0 %v2277
    %2498 = vmatpush1.bf16.msra.mxu0 %v2276
    %2499 = vmatprep.subr.bf16.mxu0 %v2281
    %2500 = vmatpush1.bf16.msra.mxu0 %v2280
    %2501 = vmatprep.subr.bf16.mxu0 %v2285
    %2502 = vmatpush1.bf16.msra.mxu0 %v2284
    %2503 = vmatprep.subr.bf16.mxu0 %v2289
    %2504 = vmatpush1.bf16.msra.mxu0 %v2288
    %2505 = vmatprep.subr.bf16.mxu0 %v2293
    %2506 = vmatpush1.bf16.msra.mxu0 %v2292
    %2507 = vmatprep.subr.bf16.mxu0 %v2297
    %2508 = vmatpush1.bf16.msra.mxu0 %v2296
    %2509 = vmatprep.subr.bf16.mxu0 %v2301
    %2510 = vmatpush1.bf16.msra.mxu0 %v2300
    %2511 = vmatprep.subr.bf16.mxu0 %v2305
    %2512 = vmatpush1.bf16.msra.mxu0 %v2304
    %2513 = vmatprep.subr.bf16.mxu0 %v2309
    %2514 = vmatpush1.bf16.msra.mxu0 %v2308
    %2515 = vmatprep.subr.bf16.mxu0 %v2313
    %2516 = vmatpush1.bf16.msra.mxu0 %v2312
    %2517 = vmatprep.mubr.bf16.mxu0 %v1675
    %2518 = vmatmul.mubr.bf16.gmra.mrb[0].mxu0 %v1674
    %v2519 = vpop.f32.mrb[0].mxu0
    %v2520 = vadd.f32 %v2479, %v2519
    %v2521 = vpop.f32.mrb[0].mxu0
    %v2522 = vadd.f32 %v2481, %v2521
    %v2523 = vpop.f32.mrb[0].mxu0
    %v2524 = vpop.f32.mrb[0].mxu0
    %2525 = vdwg.mxu0
    %2526 = vmatprep.subr.bf16.mxu0 %v2191
    %2527 = vmatpush1.bf16.msra.mxu0 %v2190
    %2528 = vmatprep.subr.bf16.mxu0 %v2195
    %2529 = vmatpush1.bf16.msra.mxu0 %v2194
    %2530 = vmatprep.subr.bf16.mxu0 %v2199
    %2531 = vmatpush1.bf16.msra.mxu0 %v2198
    %2532 = vmatprep.subr.bf16.mxu0 %v2203
    %2533 = vmatpush1.bf16.msra.mxu0 %v2202
    %2534 = vmatprep.subr.bf16.mxu0 %v2207
    %2535 = vmatpush1.bf16.msra.mxu0 %v2206
    %2536 = vmatprep.subr.bf16.mxu0 %v2211
    %2537 = vmatpush1.bf16.msra.mxu0 %v2210
    %2538 = vmatprep.subr.bf16.mxu0 %v2215
    %2539 = vmatpush1.bf16.msra.mxu0 %v2214
    %2540 = vmatprep.subr.bf16.mxu0 %v2219
    %2541 = vmatpush1.bf16.msra.mxu0 %v2218
    %2542 = vmatprep.subr.bf16.mxu0 %v2223
    %2543 = vmatpush1.bf16.msra.mxu0 %v2222
    %2544 = vmatprep.subr.bf16.mxu0 %v2227
    %2545 = vmatpush1.bf16.msra.mxu0 %v2226
    %2546 = vmatprep.subr.bf16.mxu0 %v2231
    %2547 = vmatpush1.bf16.msra.mxu0 %v2230
    %2548 = vmatprep.subr.bf16.mxu0 %v2235
    %2549 = vmatpush1.bf16.msra.mxu0 %v2234
    %2550 = vmatprep.subr.bf16.mxu0 %v2239
    %2551 = vmatpush1.bf16.msra.mxu0 %v2238
    %2552 = vmatprep.subr.bf16.mxu0 %v2243
    %2553 = vmatpush1.bf16.msra.mxu0 %v2242
    %2554 = vmatprep.subr.bf16.mxu0 %v2247
    %2555 = vmatpush1.bf16.msra.mxu0 %v2246
    %2556 = vmatprep.subr.bf16.mxu0 %v2251
    %2557 = vmatpush1.bf16.msra.mxu0 %v2250
    %2558 = vmatprep.mubr.bf16.mxu0 %v1673
    %2559 = vmatmul.mubr.bf16.gmra.mrb[0].mxu0 %v1672
    %v2560 = vpop.f32.mrb[0].mxu0
    %v2561 = vadd.f32 0.0, %v2560
    %v2562 = vpop.f32.mrb[0].mxu0
    %v2563 = vadd.f32 0.0, %v2562
    %v2564 = vpop.f32.mrb[0].mxu0
    %v2565 = vpop.f32.mrb[0].mxu0
    %2566 = vdwg.mxu0
    %2567 = vmatprep.subr.bf16.mxu0 %v2255
    %2568 = vmatpush1.bf16.msra.mxu0 %v2254
    %2569 = vmatprep.subr.bf16.mxu0 %v2259
    %2570 = vmatpush1.bf16.msra.mxu0 %v2258
    %2571 = vmatprep.subr.bf16.mxu0 %v2263
    %2572 = vmatpush1.bf16.msra.mxu0 %v2262
    %2573 = vmatprep.subr.bf16.mxu0 %v2267
    %2574 = vmatpush1.bf16.msra.mxu0 %v2266
    %2575 = vmatprep.subr.bf16.mxu0 %v2271
    %2576 = vmatpush1.bf16.msra.mxu0 %v2270
    %2577 = vmatprep.subr.bf16.mxu0 %v2275
    %2578 = vmatpush1.bf16.msra.mxu0 %v2274
    %2579 = vmatprep.subr.bf16.mxu0 %v2279
    %2580 = vmatpush1.bf16.msra.mxu0 %v2278
    %2581 = vmatprep.subr.bf16.mxu0 %v2283
    %2582 = vmatpush1.bf16.msra.mxu0 %v2282
    %2583 = vmatprep.subr.bf16.mxu0 %v2287
    %2584 = vmatpush1.bf16.msra.mxu0 %v2286
    %2585 = vmatprep.subr.bf16.mxu0 %v2291
    %2586 = vmatpush1.bf16.msra.mxu0 %v2290
    %2587 = vmatprep.subr.bf16.mxu0 %v2295
    %2588 = vmatpush1.bf16.msra.mxu0 %v2294
    %2589 = vmatprep.subr.bf16.mxu0 %v2299
    %2590 = vmatpush1.bf16.msra.mxu0 %v2298
    %2591 = vmatprep.subr.bf16.mxu0 %v2303
    %2592 = vmatpush1.bf16.msra.mxu0 %v2302
    %2593 = vmatprep.subr.bf16.mxu0 %v2307
    %2594 = vmatpush1.bf16.msra.mxu0 %v2306
    %2595 = vmatprep.subr.bf16.mxu0 %v2311
    %2596 = vmatpush1.bf16.msra.mxu0 %v2310
    %2597 = vmatprep.subr.bf16.mxu0 %v2315
    %2598 = vmatpush1.bf16.msra.mxu0 %v2314
    %2599 = vmatprep.mubr.bf16.mxu0 %v1675
    %2600 = vmatmul.mubr.bf16.gmra.mrb[0].mxu0 %v1674
    %v2601 = vpop.f32.mrb[0].mxu0
    %v2602 = vadd.f32 %v2561, %v2601
    %v2603 = vpop.f32.mrb[0].mxu0
    %v2604 = vadd.f32 %v2563, %v2603
    %v2605 = vpop.f32.mrb[0].mxu0
    %v2606 = vpop.f32.mrb[0].mxu0
    %2607 = vdwg.mxu0
    %vm2608 = vcmask 1041408
    %v2609 = vsel %vm2608, %v2520, 0.0
    %v2610 = vrot.slane %v2609, 4
    %v2611 = vadd.f32 %v2609, %v2610
    %v2612 = vrot.slane %v2611, 2
    %v2613 = vadd.f32 %v2611, %v2612
    %v2614 = vrot.slane %v2613, 1
    %v2615 = vadd.f32 %v2613, %v2614
    %v2616 = vsel %vm2608, %v2522, 0.0
    %v2617 = vrot.slane %v2616, 4
    %v2618 = vadd.f32 %v2616, %v2617
    %v2619 = vrot.slane %v2618, 2
    %v2620 = vadd.f32 %v2618, %v2619
    %v2621 = vrot.slane %v2620, 1
    %v2622 = vadd.f32 %v2620, %v2621
    %v2623 = vsel %vm2608, %v2602, 0.0
    %v2624 = vrot.slane %v2623, 4
    %v2625 = vadd.f32 %v2623, %v2624
    %v2626 = vrot.slane %v2625, 2
    %v2627 = vadd.f32 %v2625, %v2626
    %v2628 = vrot.slane %v2627, 1
    %v2629 = vadd.f32 %v2627, %v2628
    %v2630 = vsel %vm2608, %v2604, 0.0
    %v2631 = vrot.slane %v2630, 4
    %v2632 = vadd.f32 %v2630, %v2631
    %v2633 = vrot.slane %v2632, 2
    %v2634 = vadd.f32 %v2632, %v2633
    %v2635 = vrot.slane %v2634, 1
    %v2636 = vadd.f32 %v2634, %v2635
    %v2637 = vrcp.pop 2.0
    %v2638 = vmul.f32 %v2615, %v2637
    %v2639 = vmul.f32 %v2622, %v2637
    %v2640 = vmul.f32 %v2629, %v2637
    %v2641 = vmul.f32 %v2636, %v2637
    %v2642 = vsub.f32 %v2520, %v2638
    %v2643 = vsub.f32 %v2522, %v2639
    %v2644 = vsub.f32 %v2602, %v2640
    %v2645 = vsub.f32 %v2604, %v2641
    %v2646 = vmul.f32 %v2642, %v2642
    %v2647 = vmul.f32 %v2643, %v2643
    %v2648 = vmul.f32 %v2644, %v2644
    %v2649 = vmul.f32 %v2645, %v2645
    %v2650 = vsel %vm2608, %v2646, 0.0
    %v2651 = vrot.slane %v2650, 4
    %v2652 = vadd.f32 %v2650, %v2651
    %v2653 = vrot.slane %v2652, 2
    %v2654 = vadd.f32 %v2652, %v2653
    %v2655 = vrot.slane %v2654, 1
    %v2656 = vadd.f32 %v2654, %v2655
    %v2657 = vsel %vm2608, %v2647, 0.0
    %v2658 = vrot.slane %v2657, 4
    %v2659 = vadd.f32 %v2657, %v2658
    %v2660 = vrot.slane %v2659, 2
    %v2661 = vadd.f32 %v2659, %v2660
    %v2662 = vrot.slane %v2661, 1
    %v2663 = vadd.f32 %v2661, %v2662
    %v2664 = vsel %vm2608, %v2648, 0.0
    %v2665 = vrot.slane %v2664, 4
    %v2666 = vadd.f32 %v2664, %v2665
    %v2667 = vrot.slane %v2666, 2
    %v2668 = vadd.f32 %v2666, %v2667
    %v2669 = vrot.slane %v2668, 1
    %v2670 = vadd.f32 %v2668, %v2669
    %v2671 = vsel %vm2608, %v2649, 0.0
    %v2672 = vrot.slane %v2671, 4
    %v2673 = vadd.f32 %v2671, %v2672
    %v2674 = vrot.slane %v2673, 2
    %v2675 = vadd.f32 %v2673, %v2674
    %v2676 = vrot.slane %v2675, 1
    %v2677 = vadd.f32 %v2675, %v2676
    %v2678 = vmul.f32 %v2656, %v2637
    %v2679 = vmul.f32 %v2663, %v2637
    %v2680 = vmul.f32 %v2670, %v2637
    %v2681 = vmul.f32 %v2677, %v2637
    %v2682 = vadd.f32 %v2678, 1e-05
    %v2683 = vadd.f32 %v2679, 1e-05
    %v2684 = vadd.f32 %v2680, 1e-05
    %v2685 = vadd.f32 %v2681, 1e-05
    %v2686 = vrsqrt.pop %v2682
    %v2687 = vrsqrt.pop %v2683
    %v2688 = vrsqrt.pop %v2684
    %v2689 = vrsqrt.pop %v2685
    %v2690 = vmul.f32 %v2642, %v2686
    %v2691 = vmul.f32 %v2643, %v2687
    %v2692 = vmul.f32 %v2644, %v2688
    %v2693 = vmul.f32 %v2645, %v2689
    %v2694 = vld [vmem:[%s4] sm:$0xf]
    %v2696 = vlaneseq
    %v2697 = vshrl.u32 %v2696, 7
    %v2698 = vsub.s32 0, %v2697
    %v2699 = vrot.slane %v2694, %v2698
    %v2700 = vlaneseq
    %v2701 = vshrl.u32 %v2700, 7
    %v2702 = vsub.s32 1, %v2701
    %v2703 = vrot.slane %v2694, %v2702
    %v2704 = vlaneseq
    %v2705 = vshrl.u32 %v2704, 7
    %v2706 = vsub.s32 2, %v2705
    %v2707 = vrot.slane %v2694, %v2706
    %v2708 = vlaneseq
    %v2709 = vshrl.u32 %v2708, 7
    %v2710 = vsub.s32 3, %v2709
    %v2711 = vrot.slane %v2694, %v2710
    %v2716 = vmul.f32 %v2690, %v2699
    %v2717 = vmul.f32 %v2691, %v2703
    %v2718 = vmul.f32 %v2692, %v2707
    %v2719 = vmul.f32 %v2693, %v2711
    %v2720 = vld [vmem:[%s5] sm:$0xf]
    %v2722 = vlaneseq
    %v2723 = vshrl.u32 %v2722, 7
    %v2724 = vsub.s32 0, %v2723
    %v2725 = vrot.slane %v2720, %v2724
    %v2726 = vlaneseq
    %v2727 = vshrl.u32 %v2726, 7
    %v2728 = vsub.s32 1, %v2727
    %v2729 = vrot.slane %v2720, %v2728
    %v2730 = vlaneseq
    %v2731 = vshrl.u32 %v2730, 7
    %v2732 = vsub.s32 2, %v2731
    %v2733 = vrot.slane %v2720, %v2732
    %v2734 = vlaneseq
    %v2735 = vshrl.u32 %v2734, 7
    %v2736 = vsub.s32 3, %v2735
    %v2737 = vrot.slane %v2720, %v2736
    %v2742 = vadd.f32 %v2716, %v2725
    %v2743 = vadd.f32 %v2717, %v2729
    %v2744 = vadd.f32 %v2718, %v2733
    %v2745 = vadd.f32 %v2719, %v2737
    %v2746 = vmax.f32 %v2742, 0.0
    %v2747 = vmax.f32 %v2743, 0.0
    %v2748 = vmax.f32 %v2744, 0.0
    %v2749 = vmax.f32 %v2745, 0.0
    %v2750 = vpack.c.bf16 %v2746, %v2746
    %v2751 = vpack.c.bf16 %v2747, %v2747
    %v2752 = vpack.c.bf16 %v2748, %v2748
    %v2753 = vpack.c.bf16 %v2749, %v2749
    %v2754 = vld [vmem:[%s6] sm:$0xf]
    %v2755 = vld [vmem:[%s6 + $0x4] sm:$0xf]
    %v2756 = vld [vmem:[%s6 + $0x8] sm:$0xf]
    %v2757 = vld [vmem:[%s6 + $0xc] sm:$0xf]
    %v2758 = vld [vmem:[%s6 + $0x10] sm:$0xf]
    %v2759 = vld [vmem:[%s6 + $0x14] sm:$0xf]
    %v2760 = vld [vmem:[%s6 + $0x18] sm:$0xf]
    %v2761 = vld [vmem:[%s6 + $0x1c] sm:$0xf]
    %v2762 = vld [vmem:[%s6 + $0x20] sm:$0xf]
    %v2763 = vld [vmem:[%s6 + $0x24] sm:$0xf]
    %v2764 = vld [vmem:[%s6 + $0x28] sm:$0xf]
    %v2765 = vld [vmem:[%s6 + $0x2c] sm:$0xf]
    %v2766 = vld [vmem:[%s6 + $0x30] sm:$0xf]
    %v2767 = vld [vmem:[%s6 + $0x34] sm:$0xf]
    %v2768 = vld [vmem:[%s6 + $0x38] sm:$0xf]
    %v2769 = vld [vmem:[%s6 + $0x3c] sm:$0xf]
    %v2770 = vld [vmem:[%s6 + $0x40] sm:$0xf]
    %v2771 = vld [vmem:[%s6 + $0x44] sm:$0xf]
    %v2772 = vld [vmem:[%s6 + $0x48] sm:$0xf]
    %v2773 = vld [vmem:[%s6 + $0x4c] sm:$0xf]
    %v2774 = vld [vmem:[%s6 + $0x50] sm:$0xf]
    %v2775 = vld [vmem:[%s6 + $0x54] sm:$0xf]
    %v2776 = vld [vmem:[%s6 + $0x58] sm:$0xf]
    %v2777 = vld [vmem:[%s6 + $0x5c] sm:$0xf]
    %v2778 = vld [vmem:[%s6 + $0x60] sm:$0xf]
    %v2779 = vld [vmem:[%s6 + $0x64] sm:$0xf]
    %v2780 = vld [vmem:[%s6 + $0x68] sm:$0xf]
    %v2781 = vld [vmem:[%s6 + $0x6c] sm:$0xf]
    %v2782 = vld [vmem:[%s6 + $0x70] sm:$0xf]
    %v2783 = vld [vmem:[%s6 + $0x74] sm:$0xf]
    %v2784 = vld [vmem:[%s6 + $0x78] sm:$0xf]
    %v2785 = vld [vmem:[%s6 + $0x7c] sm:$0xf]
    %v2786 = vld [vmem:[%s6 + $0x80] sm:$0xf]
    %v2787 = vld [vmem:[%s6 + $0x84] sm:$0xf]
    %v2788 = vld [vmem:[%s6 + $0x88] sm:$0xf]
    %v2789 = vld [vmem:[%s6 + $0x8c] sm:$0xf]
    %v2790 = vld [vmem:[%s6 + $0x90] sm:$0xf]
    %v2791 = vld [vmem:[%s6 + $0x94] sm:$0xf]
    %v2792 = vld [vmem:[%s6 + $0x98] sm:$0xf]
    %v2793 = vld [vmem:[%s6 + $0x9c] sm:$0xf]
    %v2794 = vld [vmem:[%s6 + $0xa0] sm:$0xf]
    %v2795 = vld [vmem:[%s6 + $0xa4] sm:$0xf]
    %v2796 = vld [vmem:[%s6 + $0xa8] sm:$0xf]
    %v2797 = vld [vmem:[%s6 + $0xac] sm:$0xf]
    %v2798 = vld [vmem:[%s6 + $0xb0] sm:$0xf]
    %v2799 = vld [vmem:[%s6 + $0xb4] sm:$0xf]
    %v2800 = vld [vmem:[%s6 + $0xb8] sm:$0xf]
    %v2801 = vld [vmem:[%s6 + $0xbc] sm:$0xf]
    %v2802 = vld [vmem:[%s6 + $0xc0] sm:$0xf]
    %v2803 = vld [vmem:[%s6 + $0xc4] sm:$0xf]
    %v2804 = vld [vmem:[%s6 + $0xc8] sm:$0xf]
    %v2805 = vld [vmem:[%s6 + $0xcc] sm:$0xf]
    %v2806 = vld [vmem:[%s6 + $0xd0] sm:$0xf]
    %v2807 = vld [vmem:[%s6 + $0xd4] sm:$0xf]
    %v2808 = vld [vmem:[%s6 + $0xd8] sm:$0xf]
    %v2809 = vld [vmem:[%s6 + $0xdc] sm:$0xf]
    %v2810 = vld [vmem:[%s6 + $0xe0] sm:$0xf]
    %v2811 = vld [vmem:[%s6 + $0xe4] sm:$0xf]
    %v2812 = vld [vmem:[%s6 + $0xe8] sm:$0xf]
    %v2813 = vld [vmem:[%s6 + $0xec] sm:$0xf]
    %v2814 = vld [vmem:[%s6 + $0xf0] sm:$0xf]
    %v2815 = vld [vmem:[%s6 + $0xf4] sm:$0xf]
    %v2816 = vld [vmem:[%s6 + $0xf8] sm:$0xf]
    %v2817 = vld [vmem:[%s6 + $0xfc] sm:$0xf]
    %v2818 = vld [vmem:[%s7] sm:$0x1]
    %v2820 = vlaneseq
    %v2821 = vshrl.u32 %v2820, 7
    %v2822 = vsub.s32 0, %v2821
    %v2823 = vrot.slane %v2818, %v2822
    %v2889 = vunpack.c.l.b16 %v2754
    %v2890 = vunpack.c.l.b16 %v2755
    %v2891 = vunpack.c.l.b16 %v2756
    %v2892 = vunpack.c.l.b16 %v2757
    %v2893 = vunpack.c.l.b16 %v2758
    %v2894 = vunpack.c.l.b16 %v2759
    %v2895 = vunpack.c.l.b16 %v2760
    %v2896 = vunpack.c.l.b16 %v2761
    %v2897 = vunpack.c.l.b16 %v2762
    %v2898 = vunpack.c.l.b16 %v2763
    %v2899 = vunpack.c.l.b16 %v2764
    %v2900 = vunpack.c.l.b16 %v2765
    %v2901 = vunpack.c.l.b16 %v2766
    %v2902 = vunpack.c.l.b16 %v2767
    %v2903 = vunpack.c.l.b16 %v2768
    %v2904 = vunpack.c.l.b16 %v2769
    %v2905 = vunpack.c.l.b16 %v2770
    %v2906 = vunpack.c.l.b16 %v2771
    %v2907 = vunpack.c.l.b16 %v2772
    %v2908 = vunpack.c.l.b16 %v2773
    %v2909 = vunpack.c.l.b16 %v2774
    %v2910 = vunpack.c.l.b16 %v2775
    %v2911 = vunpack.c.l.b16 %v2776
    %v2912 = vunpack.c.l.b16 %v2777
    %v2913 = vunpack.c.l.b16 %v2778
    %v2914 = vunpack.c.l.b16 %v2779
    %v2915 = vunpack.c.l.b16 %v2780
    %v2916 = vunpack.c.l.b16 %v2781
    %v2917 = vunpack.c.l.b16 %v2782
    %v2918 = vunpack.c.l.b16 %v2783
    %v2919 = vunpack.c.l.b16 %v2784
    %v2920 = vunpack.c.l.b16 %v2785
    %v2921 = vunpack.c.l.b16 %v2786
    %v2922 = vunpack.c.l.b16 %v2787
    %v2923 = vunpack.c.l.b16 %v2788
    %v2924 = vunpack.c.l.b16 %v2789
    %v2925 = vunpack.c.l.b16 %v2790
    %v2926 = vunpack.c.l.b16 %v2791
    %v2927 = vunpack.c.l.b16 %v2792
    %v2928 = vunpack.c.l.b16 %v2793
    %v2929 = vunpack.c.l.b16 %v2794
    %v2930 = vunpack.c.l.b16 %v2795
    %v2931 = vunpack.c.l.b16 %v2796
    %v2932 = vunpack.c.l.b16 %v2797
    %v2933 = vunpack.c.l.b16 %v2798
    %v2934 = vunpack.c.l.b16 %v2799
    %v2935 = vunpack.c.l.b16 %v2800
    %v2936 = vunpack.c.l.b16 %v2801
    %v2937 = vunpack.c.l.b16 %v2802
    %v2938 = vunpack.c.l.b16 %v2803
    %v2939 = vunpack.c.l.b16 %v2804
    %v2940 = vunpack.c.l.b16 %v2805
    %v2941 = vunpack.c.l.b16 %v2806
    %v2942 = vunpack.c.l.b16 %v2807
    %v2943 = vunpack.c.l.b16 %v2808
    %v2944 = vunpack.c.l.b16 %v2809
    %v2945 = vunpack.c.l.b16 %v2810
    %v2946 = vunpack.c.l.b16 %v2811
    %v2947 = vunpack.c.l.b16 %v2812
    %v2948 = vunpack.c.l.b16 %v2813
    %v2949 = vunpack.c.l.b16 %v2814
    %v2950 = vunpack.c.l.b16 %v2815
    %v2951 = vunpack.c.l.b16 %v2816
    %v2952 = vunpack.c.l.b16 %v2817
    %v2953 = vpack.c.b16 %v2890, %v2889
    %v2954 = vpack.c.b16 %v2892, %v2891
    %v2955 = vpack.c.b16 %v2894, %v2893
    %v2956 = vpack.c.b16 %v2896, %v2895
    %v2957 = vpack.c.b16 %v2898, %v2897
    %v2958 = vpack.c.b16 %v2900, %v2899
    %v2959 = vpack.c.b16 %v2902, %v2901
    %v2960 = vpack.c.b16 %v2904, %v2903
    %v2961 = vpack.c.b16 %v2906, %v2905
    %v2962 = vpack.c.b16 %v2908, %v2907
    %v2963 = vpack.c.b16 %v2910, %v2909
    %v2964 = vpack.c.b16 %v2912, %v2911
    %v2965 = vpack.c.b16 %v2914, %v2913
    %v2966 = vpack.c.b16 %v2916, %v2915
    %v2967 = vpack.c.b16 %v2918, %v2917
    %v2968 = vpack.c.b16 %v2920, %v2919
    %v2969 = vpack.c.b16 %v2922, %v2921
    %v2970 = vpack.c.b16 %v2924, %v2923
    %v2971 = vpack.c.b16 %v2926, %v2925
    %v2972 = vpack.c.b16 %v2928, %v2927
    %v2973 = vpack.c.b16 %v2930, %v2929
    %v2974 = vpack.c.b16 %v2932, %v2931
    %v2975 = vpack.c.b16 %v2934, %v2933
    %v2976 = vpack.c.b16 %v2936, %v2935
    %v2977 = vpack.c.b16 %v2938, %v2937
    %v2978 = vpack.c.b16 %v2940, %v2939
    %v2979 = vpack.c.b16 %v2942, %v2941
    %v2980 = vpack.c.b16 %v2944, %v2943
    %v2981 = vpack.c.b16 %v2946, %v2945
    %v2982 = vpack.c.b16 %v2948, %v2947
    %v2983 = vpack.c.b16 %v2950, %v2949
    %v2984 = vpack.c.b16 %v2952, %v2951
    %3017 = vmatprep.subr.bf16.mxu0 0
    %3018 = vmatpush1.bf16.msra.mxu0 %v2953
    %3019 = vmatprep.subr.bf16.mxu0 0
    %3020 = vmatpush1.bf16.msra.mxu0 %v2954
    %3021 = vmatprep.subr.bf16.mxu0 0
    %3022 = vmatpush1.bf16.msra.mxu0 %v2955
    %3023 = vmatprep.subr.bf16.mxu0 0
    %3024 = vmatpush1.bf16.msra.mxu0 %v2956
    %3025 = vmatprep.subr.bf16.mxu0 0
    %3026 = vmatpush1.bf16.msra.mxu0 %v2957
    %3027 = vmatprep.subr.bf16.mxu0 0
    %3028 = vmatpush1.bf16.msra.mxu0 %v2958
    %3029 = vmatprep.subr.bf16.mxu0 0
    %3030 = vmatpush1.bf16.msra.mxu0 %v2959
    %3031 = vmatprep.subr.bf16.mxu0 0
    %3032 = vmatpush1.bf16.msra.mxu0 %v2960
    %3033 = vmatprep.subr.bf16.mxu0 0
    %3034 = vmatpush1.bf16.msra.mxu0 %v2961
    %3035 = vmatprep.subr.bf16.mxu0 0
    %3036 = vmatpush1.bf16.msra.mxu0 %v2962
    %3037 = vmatprep.subr.bf16.mxu0 0
    %3038 = vmatpush1.bf16.msra.mxu0 %v2963
    %3039 = vmatprep.subr.bf16.mxu0 0
    %3040 = vmatpush1.bf16.msra.mxu0 %v2964
    %3041 = vmatprep.subr.bf16.mxu0 0
    %3042 = vmatpush1.bf16.msra.mxu0 %v2965
    %3043 = vmatprep.subr.bf16.mxu0 0
    %3044 = vmatpush1.bf16.msra.mxu0 %v2966
    %3045 = vmatprep.subr.bf16.mxu0 0
    %3046 = vmatpush1.bf16.msra.mxu0 %v2967
    %3047 = vmatprep.subr.bf16.mxu0 0
    %3048 = vmatpush1.bf16.msra.mxu0 %v2968
    %3049 = vmatprep.mubr.bf16.mxu0 %v2751
    %3050 = vmatmul.mubr.bf16.gmra.mrb[0].mxu0 %v2750
    %v3051 = vpop.f32.mrb[0].mxu0
    %v3052 = vadd.f32 %v2823, %v3051
    %v3053 = vpop.f32.mrb[0].mxu0
    %v3054 = vpop.f32.mrb[0].mxu0
    %v3055 = vpop.f32.mrb[0].mxu0
    %3056 = vdwg.mxu0
    %3057 = vmatprep.subr.bf16.mxu0 0
    %3058 = vmatpush1.bf16.msra.mxu0 %v2969
    %3059 = vmatprep.subr.bf16.mxu0 0
    %3060 = vmatpush1.bf16.msra.mxu0 %v2970
    %3061 = vmatprep.subr.bf16.mxu0 0
    %3062 = vmatpush1.bf16.msra.mxu0 %v2971
    %3063 = vmatprep.subr.bf16.mxu0 0
    %3064 = vmatpush1.bf16.msra.mxu0 %v2972
    %3065 = vmatprep.subr.bf16.mxu0 0
    %3066 = vmatpush1.bf16.msra.mxu0 %v2973
    %3067 = vmatprep.subr.bf16.mxu0 0
    %3068 = vmatpush1.bf16.msra.mxu0 %v2974
    %3069 = vmatprep.subr.bf16.mxu0 0
    %3070 = vmatpush1.bf16.msra.mxu0 %v2975
    %3071 = vmatprep.subr.bf16.mxu0 0
    %3072 = vmatpush1.bf16.msra.mxu0 %v2976
    %3073 = vmatprep.subr.bf16.mxu0 0
    %3074 = vmatpush1.bf16.msra.mxu0 %v2977
    %3075 = vmatprep.subr.bf16.mxu0 0
    %3076 = vmatpush1.bf16.msra.mxu0 %v2978
    %3077 = vmatprep.subr.bf16.mxu0 0
    %3078 = vmatpush1.bf16.msra.mxu0 %v2979
    %3079 = vmatprep.subr.bf16.mxu0 0
    %3080 = vmatpush1.bf16.msra.mxu0 %v2980
    %3081 = vmatprep.subr.bf16.mxu0 0
    %3082 = vmatpush1.bf16.msra.mxu0 %v2981
    %3083 = vmatprep.subr.bf16.mxu0 0
    %3084 = vmatpush1.bf16.msra.mxu0 %v2982
    %3085 = vmatprep.subr.bf16.mxu0 0
    %3086 = vmatpush1.bf16.msra.mxu0 %v2983
    %3087 = vmatprep.subr.bf16.mxu0 0
    %3088 = vmatpush1.bf16.msra.mxu0 %v2984
    %3089 = vmatprep.mubr.bf16.mxu0 %v2753
    %3090 = vmatmul.mubr.bf16.gmra.mrb[0].mxu0 %v2752
    %v3091 = vpop.f32.mrb[0].mxu0
    %v3092 = vadd.f32 %v3052, %v3091
    %v3093 = vpop.f32.mrb[0].mxu0
    %v3094 = vpop.f32.mrb[0].mxu0
    %v3095 = vpop.f32.mrb[0].mxu0
    %3096 = vdwg.mxu0
    %v3097 = vmul.f32 %v1526, %v1526
    %v3098 = vmul.f32 %v1528, %v1528
    %v3099 = vmul.f32 %v1668, %v1668
    %v3100 = vmul.f32 %v1670, %v1670
    %v3101 = vsel %vm2608, %v3097, 0.0
    %v3102 = vsel %vm2608, %v3098, 0.0
    %v3103 = vadd.f32 %v3101, %v3102
    %v3104 = vsel %vm2608, %v3099, 0.0
    %v3105 = vadd.f32 %v3103, %v3104
    %v3106 = vsel %vm2608, %v3100, 0.0
    %v3107 = vadd.f32 %v3105, %v3106
    %3108 = vadd.xlane.f32.xlu0 %v3107
    %v3109 = vpop.xlane.xlu0 %3108
    %v3110 = vmax.f32 %v3109, 1e-24
    %v3111 = vrsqrt.pop %v3110
    %v3112 = vmul.f32 %v1526, %v3111
    %v3113 = vmul.f32 %v1528, %v3111
    %v3114 = vmul.f32 %v1668, %v3111
    %v3115 = vmul.f32 %v1670, %v3111
    %v3120 = vcombine.low %v3112, %v3113
    %v3121 = vcombine.low %v3114, %v3115
    %v3123 = vunpack.c.l.s4 1983009808
    %v3124 = vunpack.c.0.s8 %v3123
    %v3125 = vlaneseq
    %v3126 = vshrl.u32 %v3125, 7
    %v3127 = vsub.s32 %v3124, %v3126
    %v3128 = vrot.slane %v3120, %v3127
    %v3130 = vunpack.c.l.s4 1983009808
    %v3131 = vunpack.c.0.s8 %v3130
    %v3132 = vlaneseq
    %v3133 = vshrl.u32 %v3132, 7
    %v3134 = vsub.s32 %v3131, %v3133
    %v3135 = vrot.slane %v3121, %v3134
    %v3136 = vcombine.low %v3128, %v3135
    %3138 = vst [vmem:[#allocation2] sm:$0xff] %v3136
    %v3139 = vmul.f32 %v3092, %v3092
    %v3140 = vsel %vm2608, %v3139, 0.0
    %3141 = vadd.xlane.f32.xlu0 %v3140
    %v3142 = vpop.xlane.xlu0 %3141
    %v3143 = vmax.f32 %v3142, 1e-24
    %v3144 = vrsqrt.pop %v3143
    %v3145 = vmul.f32 %v3092, %v3144
    %3146 = vst [vmem:[#allocation4] sm:$0x3] %v3145
    // Predicated region
    $region34: #{ipirm_from_image.1} parent=1 // pred_check
      _
    $region35: #{ipirm_from_image.1} parent=1 // pred_check_branch
      %3148 = sbr.rel (0) target = $region37
    $region36: #{ipirm_from_image.1} parent=1 // pred_region
      %s3150 = ssub.s32 128, 128
      %3151 = vsyncadd [#allocation3], %s3150
      %s3153 = sshll.u32 [#allocation2], 4
      %s3154 = int_to_ptr.vmem [resolvable:$true] %s3153
      %3156 = dma.vmem_to_hbm [thread:$0]  %s3154, 128, %s8, [#allocation3]
    $region37: #{ipirm_from_image.1} parent=1 // pred_fallthru
      _
    // Predicated region
    $region38: #{ipirm_from_image.1} parent=1 // pred_check
      _
    $region39: #{ipirm_from_image.1} parent=1 // pred_check_branch
      %3158 = sbr.rel (0) target = $region41
    $region40: #{ipirm_from_image.1} parent=1 // pred_region
      %s3160 = ssub.s32 32, 32
      %3161 = vsyncadd [#allocation5], %s3160
      %s3163 = sshll.u32 [#allocation4], 4
      %s3164 = int_to_ptr.vmem [resolvable:$true] %s3163
      %3166 = dma.vmem_to_hbm [thread:$0]  %s3164, 32, %s9, [#allocation5]
    $region41: #{ipirm_from_image.1} parent=1 // pred_fallthru
      _
    // Predicated region
    $region42: #{ipirm_from_image.1} parent=1 // pred_check
      _
    $region43: #{ipirm_from_image.1} parent=1 // pred_check_branch
      %3168 = sbr.rel (0) target = $region45
    $region44: #{ipirm_from_image.1} parent=1 // pred_region
      %3169 = dma.done [#allocation3], 128
    $region45: #{ipirm_from_image.1} parent=1 // pred_fallthru
      _
    // Predicated region
    $region46: #{ipirm_from_image.1} parent=1 // pred_check
      _
    $region47: #{ipirm_from_image.1} parent=1 // pred_check_branch
      %3171 = sbr.rel (0) target = $region49
    $region48: #{ipirm_from_image.1} parent=1 // pred_region
      %3172 = dma.done [#allocation5], 32
    $region49: #{ipirm_from_image.1} parent=1 // pred_fallthru
      _
    %3173 = vsyncpa [#allocation3], 1
    %3174 = vsyncpa [#allocation5], 1

</llo_original>
